<compile_context>
chip_gen: v5e
topology: v5e:2x2
jax: 0.10.0
libtpu: 0.0.40
codegen_flags: <defaults>
</compile_context>

<pallas_src>
import functools

import jax
import jax.numpy as jnp
from jax.experimental import pallas as pl
from jax.experimental.pallas import tpu as pltpu

APPROX_RECIPROCAL = True          # ~1e-3 rel err on attn weights; False -> exact divide
FC_WEIGHT_TILE_BYTES = 4 << 20    # per-buffer fc weight tile target (sweep 4-8 MiB on v7x)
ENC_TILE_BUDGET_BYTES = 8 << 20   # streamed enc block + f32 intermediates per grid step


# ------------------------------------------------------------- helpers -----
def _round_up(x: int, m: int) -> int:
    return (x + m - 1) // m * m


def _pad_axis(x, axis, target):
    pad = target - x.shape[axis]
    if pad <= 0:
        return x
    widths = [(0, 0)] * x.ndim
    widths[axis] = (0, pad)
    return jnp.pad(x, widths)


def _vmem_capacity_bytes() -> int:
    try:
        return int(pltpu.get_tpu_info().vmem_capacity_bytes)
    except Exception:
        return 64 << 20           # conservative: v7x physical VMEM per core


def _pick_tile_s(seq_len: int, b_pad: int, h_pad: int) -> int:
    # per grid step: bf16 enc tile (double buffered) + 2 f32 (B,TILE_S,H) temps
    per_row = b_pad * h_pad * (2 * 2 + 2 * 4)
    cap = max(8, (ENC_TILE_BUDGET_BYTES // per_row) // 8 * 8)
    return min(_round_up(seq_len, 8), cap)


def _pick_tile_v(v_pad: int, h_pad: int, w_itemsize: int) -> int:
    # lane-multiple tile sized by target bytes (not a divisor list)
    t = max(128, (FC_WEIGHT_TILE_BYTES // max(1, h_pad * w_itemsize)) // 128 * 128)
    return min(t, v_pad)


# ------------------------------------------------------------- kernel 1 ----
def attn_lstm_kernel(emb_ref, h0_ref, c0_ref, enc_ref,
                     w_attn_h_ref, w_attn_e_ref, b_attn_ref, v_ref,
                     w_ih_e_ref, w_ih_c_ref, w_hh_ref, b_gates_ref,
                     ht_ref, ct_ref, ht_bf_ref,
                     m_sc, l_sc, ctx_sc, eh_sc,
                     *, seq_len, tile_s):
    s_idx = pl.program_id(0)
    enc = enc_ref[...]                               # (B, TILE_S, H) bf16
    B, TS, H = enc.shape

    @pl.when(s_idx == 0)
    def _init():
        m_sc[...] = jnp.full_like(m_sc, -jnp.inf)
        l_sc[...] = jnp.zeros_like(l_sc)
        ctx_sc[...] = jnp.zeros_like(ctx_sc)
        # h-half of attn(cat([h, enc])): computed once, reused for every S tile
        eh_sc[...] = jnp.dot(h0_ref[...].astype(jnp.bfloat16), w_attn_h_ref[...],
                             preferred_element_type=jnp.float32)

    # ---- AttentionNetworkBert energies for this S tile --------------------
    e_enc = jnp.dot(enc.reshape(B * TS, H), w_attn_e_ref[...],
                    preferred_element_type=jnp.float32).reshape(B, TS, H)
    energy = jnp.maximum(e_enc + eh_sc[...][:, None, :] + b_attn_ref[...], 0.0)
    scores = jnp.sum(energy * v_ref[...], axis=-1)   # (B, TILE_S), rides XLU slot

    if seq_len % tile_s != 0:                        # static: mask padded S positions
        pos = s_idx * tile_s + jax.lax.broadcasted_iota(jnp.int32, (1, TS), 1)
        scores = jnp.where(pos < seq_len, scores, -jnp.inf)

    # ---- online softmax + context accumulation (flash-style) --------------
    m_old = m_sc[...]
    m_new = jnp.maximum(m_old, jnp.max(scores, axis=-1, keepdims=True))
    alpha = jnp.exp(m_old - m_new)
    p = jnp.exp(scores - m_new)                      # (B, TILE_S)
    l_sc[...] = alpha * l_sc[...] + jnp.sum(p, axis=-1, keepdims=True)
    ctx_sc[...] = alpha * ctx_sc[...] + jnp.einsum(
        'bqs,bsh->bqh', p.astype(jnp.bfloat16)[:, None, :], enc,
        preferred_element_type=jnp.float32)[:, 0, :]
    m_sc[...] = m_new

    # ---- finalize: normalize context, single-step LSTM cell ---------------
    @pl.when(s_idx == pl.num_programs(0) - 1)
    def _finalize():
        if APPROX_RECIPROCAL:
            inv_l = pl.reciprocal(l_sc[...], approx=True)
        else:
            inv_l = 1.0 / l_sc[...]
        ctx = (ctx_sc[...] * inv_l).astype(jnp.bfloat16)             # (B, H)
        # LSTM(cat([emb, ctx])) split into 3 dots (no concat buffer)
        gates = (jnp.dot(emb_ref[...], w_ih_e_ref[...],
                         preferred_element_type=jnp.float32)
                 + jnp.dot(ctx, w_ih_c_ref[...],
                           preferred_element_type=jnp.float32)
                 + jnp.dot(h0_ref[...].astype(jnp.bfloat16), w_hh_ref[...],
                           preferred_element_type=jnp.float32)
                 + b_gates_ref[...])                                  # (B, 4H) [i|f|g|o]
        i = jax.nn.sigmoid(gates[:, 0:H])
        f = jax.nn.sigmoid(gates[:, H:2 * H])
        g = jnp.tanh(gates[:, 2 * H:3 * H])
        o = jax.nn.sigmoid(gates[:, 3 * H:4 * H])
        c_new = f * c0_ref[...] + i * g
        h_new = o * jnp.tanh(c_new)
        ht_ref[...] = h_new
        ct_ref[...] = c_new
        ht_bf_ref[...] = h_new.astype(jnp.bfloat16)   # consumed directly by fc kernel


# ------------------------------------------------------------- kernel 2 ----
def fc_int8_kernel(h_ref, wq_ref, scale_ref, b_ref, out_ref):
    # int8 weight streamed from HBM (halves bytes on the bandwidth-bound fc);
    # per-output-column scale can be applied after the f32-accumulated dot.
    w = wq_ref[...].astype(jnp.bfloat16)
    acc = jnp.dot(h_ref[...], w, preferred_element_type=jnp.float32)
    out_ref[...] = acc * scale_ref[...] + b_ref[...]


def fc_bf16_kernel(h_ref, w_ref, b_ref, out_ref):
    out_ref[...] = (jnp.dot(h_ref[...], w_ref[...],
                            preferred_element_type=jnp.float32) + b_ref[...])


# -------------------------------------------------------------- packing ----
def pack_params(p, embed_dim, hidden_units, quantize_fc=True):
    """Split / cast / zero-pad / pre-fuse PyTorch-layout params for the kernels.

    E, H, V are zero-padded to multiples of 128 (lane-dense loads/stores); the
    4H gate axis is padded per gate so in-kernel gate slicing stays at lane
    multiples.  All padding is mathematically inert.
    """
    E, H = embed_dim, hidden_units
    V = p["w_fc_t"].shape[1]
    Ep, Hp, Vp = _round_up(E, 128), _round_up(H, 128), _round_up(V, 128)
    bf = jnp.bfloat16

    def pad_gate_cols(w):        # (..., 4H) -> (..., 4Hp): per-gate zero padding
        lead = w.shape[:-1]
        w4 = w.reshape(*lead, 4, H)
        w4 = _pad_axis(w4, w4.ndim - 1, Hp)
        return w4.reshape(*lead, 4 * Hp)

    w_fc = _pad_axis(_pad_axis(p["w_fc_t"], 0, Hp), 1, Vp)            # (Hp, Vp) f32
    packed = dict(
        embedding=_pad_axis(p["embedding"], 1, Ep),                   # (V, Ep), row 0 zeroed
        w_attn_h=_pad_axis(_pad_axis(p["w_attn_t"][:H], 0, Hp), 1, Hp).astype(bf),
        w_attn_e=_pad_axis(_pad_axis(p["w_attn_t"][H:], 0, Hp), 1, Hp).astype(bf),
        b_attn=_pad_axis(p["b_attn"], 1, Hp),                         # (1, Hp) f32
        v_row=_pad_axis(p["v_row"], 1, Hp),                           # (1, Hp) f32
        w_ih_e=_pad_axis(pad_gate_cols(p["w_ih_t"][:E]), 0, Ep).astype(bf),
        w_ih_c=_pad_axis(pad_gate_cols(p["w_ih_t"][E:]), 0, Hp).astype(bf),
        w_hh=_pad_axis(pad_gate_cols(p["w_hh_t"]), 0, Hp).astype(bf),
        b_gates=pad_gate_cols(p["b_ih"] + p["b_hh"]),                 # (1, 4Hp) f32 pre-fused
        b_fc=_pad_axis(p["b_fc"], 1, Vp),                             # (1, Vp) f32
        fc_is_int8=bool(quantize_fc),
        dims=dict(E=E, H=H, V=V, Ep=Ep, Hp=Hp, Vp=Vp),
    )
    if quantize_fc:
        # symmetric per-output-column int8 (fp8 would be the v7x MXU-native
        # alternative; the dequant->bf16 dot used here works on all chips)
        amax = jnp.max(jnp.abs(w_fc), axis=0, keepdims=True)
        scale = jnp.where(amax > 0, amax / 127.0, 1.0).astype(jnp.float32)
        packed["w_fc_q"] = jnp.clip(jnp.round(w_fc / scale), -127, 127).astype(jnp.int8)
        packed["fc_scale"] = scale
    else:
        packed["w_fc"] = w_fc.astype(bf)
    return packed


# -------------------------------------------------------------- wrapper ----
def lstm_attn_decoder_bert(x_ids, h0_c0, encoder_out, pp):
    h0, c0 = h0_c0
    d = pp["dims"]
    H, V, Ep, Hp, Vp = d["H"], d["V"], d["Ep"], d["Hp"], d["Vp"]
    B, S, _ = encoder_out.shape
    Bp = _round_up(B, 8)
    vmem_cap = _vmem_capacity_bytes()

    tile_s = _pick_tile_s(S, Bp, Hp)
    Sp = _round_up(S, tile_s)
    n_s = Sp // tile_s

    # Host-side glue: embedding gather (padding_idx=0), dropout = eval identity,
    # casts, zero padding to hardware-friendly shapes.
    emb = _pad_axis(jnp.take(pp["embedding"], x_ids, axis=0).astype(jnp.bfloat16), 0, Bp)
    enc = _pad_axis(_pad_axis(_pad_axis(encoder_out, 2, Hp), 1, Sp), 0, Bp)
    enc = enc.astype(jnp.bfloat16)                                    # (Bp, Sp, Hp)
    h0p = _pad_axis(_pad_axis(h0.reshape(B, H), 1, Hp), 0, Bp)        # (Bp, Hp) f32
    c0p = _pad_axis(_pad_axis(c0.reshape(B, H), 1, Hp), 0, Bp)

    def resident(shape):
        n = len(shape)
        return pl.BlockSpec(shape, lambda s, _n=n: (0,) * _n)

    # ---- kernel 1: S-tiled attention (online softmax) + LSTM cell ---------
    in_specs = [
        resident((Bp, Ep)),                                   # emb
        resident((Bp, Hp)),                                   # h0
        resident((Bp, Hp)),                                   # c0
        pl.BlockSpec((Bp, tile_s, Hp), lambda s: (0, s, 0)),  # enc (streamed)
        resident((Hp, Hp)),                                   # w_attn_h
        resident((Hp, Hp)),                                   # w_attn_e
        resident((1, Hp)),                                    # b_attn
        resident((1, Hp)),                                    # v_row
        resident((Ep, 4 * Hp)),                               # w_ih_e
        resident((Hp, 4 * Hp)),                               # w_ih_c
        resident((Hp, 4 * Hp)),                               # w_hh
        resident((1, 4 * Hp)),                                # b_gates
    ]
    out_specs = (resident((Bp, Hp)), resident((Bp, Hp)), resident((Bp, Hp)))
    k1_inputs = (emb, h0p, c0p, enc,
                 pp["w_attn_h"], pp["w_attn_e"], pp["b_attn"], pp["v_row"],
                 pp["w_ih_e"], pp["w_ih_c"], pp["w_hh"], pp["b_gates"])

    # chip-aware scoped-VMEM sizing: residents + double-buffered enc tile +
    # f32 intermediates + scratch + outputs, capped at ~87% of physical VMEM.
    resident_bytes = (sum(int(a.size) * a.dtype.itemsize for a in k1_inputs)
                      - int(enc.size) * enc.dtype.itemsize)
    tile_bytes = Bp * tile_s * Hp * (2 * 2 + 2 * 4)
    scratch_bytes = (2 * Bp * Hp + 2 * Bp) * 4
    out_bytes = Bp * Hp * (4 + 4 + 2)
    need1 = resident_bytes + tile_bytes + scratch_bytes + out_bytes
    cp1_kwargs = dict(dimension_semantics=("arbitrary",))
    if need1 > (12 << 20):                 # stay silent below v5e's 16 MiB default
        cp1_kwargs["vmem_limit_bytes"] = int(min(need1 + (8 << 20), 0.87 * vmem_cap))

    k1 = functools.partial(attn_lstm_kernel, seq_len=S, tile_s=tile_s)
    ht_f, ct_f, ht_bf = pl.pallas_call(
        k1,
        grid=(n_s,),
        out_shape=(jax.ShapeDtypeStruct((Bp, Hp), jnp.float32),
                   jax.ShapeDtypeStruct((Bp, Hp), jnp.float32),
                   jax.ShapeDtypeStruct((Bp, Hp), jnp.bfloat16)),
        in_specs=in_specs,
        out_specs=out_specs,
        scratch_shapes=[pltpu.VMEM((Bp, 1), jnp.float32),    # running max
                        pltpu.VMEM((Bp, 1), jnp.float32),    # running denom
                        pltpu.VMEM((Bp, Hp), jnp.float32),   # running context
                        pltpu.VMEM((Bp, Hp), jnp.float32)],  # h0 @ W_attn_h
        compiler_params=pltpu.CompilerParams(**cp1_kwargs),
    )(*k1_inputs)

    # ---- kernel 2: fc vocab projection, vocab-tiled "parallel" grid -------
    # Weight tile picked by target bytes; pl.cdiv handles a ragged last block.
    # (pipeline_mode=pl.Buffered(3) on the weight spec is worth a sweep on v7x.)
    w_itemsize = 1 if pp["fc_is_int8"] else 2
    tile_v = _pick_tile_v(Vp, Hp, w_itemsize)
    n_v = pl.cdiv(Vp, tile_v)
    cp2 = pltpu.CompilerParams(dimension_semantics=("parallel",))
    h_spec = pl.BlockSpec((Bp, Hp), lambda j: (0, 0))
    col_spec = pl.BlockSpec((1, tile_v), lambda j: (0, j))
    out_spec = pl.BlockSpec((Bp, tile_v), lambda j: (0, j))
    if pp["fc_is_int8"]:
        out_p = pl.pallas_call(
            fc_int8_kernel,
            out_shape=jax.ShapeDtypeStruct((Bp, Vp), jnp.float32),
            grid=(n_v,),
            in_specs=[h_spec,
                      pl.BlockSpec((Hp, tile_v), lambda j: (0, j)),
                      col_spec, col_spec],
            out_specs=out_spec,
            compiler_params=cp2,
        )(ht_bf, pp["w_fc_q"], pp["fc_scale"], pp["b_fc"])
    else:
        out_p = pl.pallas_call(
            fc_bf16_kernel,
            out_shape=jax.ShapeDtypeStruct((Bp, Vp), jnp.float32),
            grid=(n_v,),
            in_specs=[h_spec,
                      pl.BlockSpec((Hp, tile_v), lambda j: (0, j)),
                      col_spec],
            out_specs=out_spec,
            compiler_params=cp2,
        )(ht_bf, pp["w_fc"], pp["b_fc"])

    # ---- slice padding off; match PyTorch output shapes --------------------
    out = out_p[:B, :V][:, None, :]                           # (B, 1, V)
    ht = ht_f[:B, :H].reshape(1, B, H)
    ct = ct_f[:B, :H].reshape(1, B, H)
    return out, (ht, ct)


# ---------------------------------------------------------------- params ---
def init_params(key, input_size, embed_dim, hidden_units):
    H, E = hidden_units, embed_dim
    ks = jax.random.split(key, 10)

    def nrm(k, shape, scale=0.05):
        return (scale * jax.random.normal(k, shape)).astype(jnp.float32)

    emb = nrm(ks[0], (input_size, E))
    emb = emb.at[0].set(0.0)                 # padding_idx=0
    return dict(
        embedding=emb,
        w_attn_t=nrm(ks[1], (2 * H, H)),     # attn.weight^T  ([ht, enc] row order)
        b_attn=nrm(ks[2], (1, H)),
        v_row=nrm(ks[3], (1, H)),            # v.weight (1, H), no bias
        w_ih_t=nrm(ks[4], (E + H, 4 * H)),   # LSTM weight_ih_l0^T (gate order i,f,g,o)
        b_ih=nrm(ks[5], (1, 4 * H)),
        w_hh_t=nrm(ks[6], (H, 4 * H)),       # LSTM weight_hh_l0^T
        b_hh=nrm(ks[7], (1, 4 * H)),
        w_fc_t=nrm(ks[8], (H, input_size)),  # fc.weight^T
        b_fc=nrm(ks[9], (1, input_size)),
    )


# -------------------------------------------------------------- reference --
def reference(x_ids, h0_c0, enc, p):
    # pure-JAX f32 reference of the same forward pass
    h0, c0 = h0_c0
    B, S, H = enc.shape
    emb = jnp.take(p["embedding"], x_ids, axis=0)
    h0_2d = h0.reshape(B, H)
    c0_2d = c0.reshape(B, H)
    ht_rep = jnp.broadcast_to(h0_2d[:, None, :], (B, S, H))
    energy = jnp.concatenate([ht_rep, enc], -1) @ p["w_attn_t"] + p["b_attn"]
    energy = jax.nn.relu(energy)
    scores = jnp.sum(energy * p["v_row"][None], -1)
    w = jax.nn.softmax(scores, axis=1)
    context = jnp.einsum('bs,bsh->bh', w, enc)
    x_cat = jnp.concatenate([emb, context], 1)
    gates = x_cat @ p["w_ih_t"] + p["b_ih"] + h0_2d @ p["w_hh_t"] + p["b_hh"]
    i = jax.nn.sigmoid(gates[:, :H])
    f = jax.nn.sigmoid(gates[:, H:2 * H])
    g = jnp.tanh(gates[:, 2 * H:3 * H])
    o = jax.nn.sigmoid(gates[:, 3 * H:])
    c_new = f * c0_2d + i * g
    h_new = o * jnp.tanh(c_new)
    out = h_new @ p["w_fc_t"] + p["b_fc"]
    return out[:, None, :], (h_new.reshape(1, B, H), c_new.reshape(1, B, H))


if __name__ == "__main__":
    B, S, H, E, V = 2, 8, 32, 16, 64   # batch, enc seq, hidden_units, embed_dim, input_size

    key = jax.random.PRNGKey(0)
    kp, kx, kh, kc, ke = jax.random.split(key, 5)

    params = init_params(kp, input_size=V, embed_dim=E, hidden_units=H)
    packed = pack_params(params, embed_dim=E, hidden_units=H, quantize_fc=True)

    x_ids = jax.random.randint(kx, (B,), 1, V, dtype=jnp.int32)
    h0 = jax.random.normal(kh, (1, B, H), dtype=jnp.float32)
    c0 = jax.random.normal(kc, (1, B, H), dtype=jnp.float32)
    encoder_out = jax.random.normal(ke, (B, S, H), dtype=jnp.float32)

    out, (ht, ct) = lstm_attn_decoder_bert(x_ids, (h0, c0), encoder_out, packed)
    jax.block_until_ready((out, ht, ct))

    ref_out, (ref_ht, ref_ct) = reference(x_ids, (h0, c0), encoder_out, params)
    assert out.shape == (B, 1, V) and ht.shape == (1, B, H) and ct.shape == (1, B, H)
    # bf16 matmul operands + int8 fc weights (f32 accumulation) -> loose tolerance
    assert jnp.allclose(out, ref_out, atol=2e-2, rtol=2e-2)
    assert jnp.allclose(ht, ref_ht, atol=1e-2, rtol=1e-2)
    assert jnp.allclose(ct, ref_ct, atol=1e-2, rtol=1e-2)

    print("KERNEL_OK")
</pallas_src>

<mosaic_0001>
module attributes {stable_mosaic.version = 11 : i64} {
  func.func @attn_lstm_kernel(%arg0: i32, %arg1: memref<8x128xbf16, #tpu.memory_space<vmem>>, %arg2: memref<8x128xf32, #tpu.memory_space<vmem>>, %arg3: memref<8x128xf32, #tpu.memory_space<vmem>>, %arg4: memref<8x8x128xbf16, #tpu.memory_space<vmem>>, %arg5: memref<128x128xbf16, #tpu.memory_space<vmem>>, %arg6: memref<128x128xbf16, #tpu.memory_space<vmem>>, %arg7: memref<1x128xf32, #tpu.memory_space<vmem>>, %arg8: memref<1x128xf32, #tpu.memory_space<vmem>>, %arg9: memref<128x512xbf16, #tpu.memory_space<vmem>>, %arg10: memref<128x512xbf16, #tpu.memory_space<vmem>>, %arg11: memref<128x512xbf16, #tpu.memory_space<vmem>>, %arg12: memref<1x512xf32, #tpu.memory_space<vmem>>, %arg13: memref<8x128xf32, #tpu.memory_space<vmem>>, %arg14: memref<8x128xf32, #tpu.memory_space<vmem>>, %arg15: memref<8x128xbf16, #tpu.memory_space<vmem>>, %arg16: memref<8x1xf32, #tpu.memory_space<vmem>>, %arg17: memref<8x1xf32, #tpu.memory_space<vmem>>, %arg18: memref<8x128xf32, #tpu.memory_space<vmem>>, %arg19: memref<8x128xf32, #tpu.memory_space<vmem>>) attributes {dimension_semantics = [#tpu.dimension_semantics<arbitrary>], iteration_bounds = array<i64: 1>, scalar_prefetch = 0 : i64, scratch_operands = 4 : i64, tpu.core_type = #tpu.core_type<tc>, window_params = [{pipeline_mode = #tpu.pipeline_mode<synchronous>, transform_indices = @transform_0, window_bounds = array<i64: 8, 128>}, {pipeline_mode = #tpu.pipeline_mode<synchronous>, transform_indices = @transform_1, window_bounds = array<i64: 8, 128>}, {pipeline_mode = #tpu.pipeline_mode<synchronous>, transform_indices = @transform_2, window_bounds = array<i64: 8, 128>}, {transform_indices = @transform_3, window_bounds = array<i64: 8, 8, 128>}, {pipeline_mode = #tpu.pipeline_mode<synchronous>, transform_indices = @transform_4, window_bounds = array<i64: 128, 128>}, {pipeline_mode = #tpu.pipeline_mode<synchronous>, transform_indices = @transform_5, window_bounds = array<i64: 128, 128>}, {pipeline_mode = #tpu.pipeline_mode<synchronous>, transform_indices = @transform_6, window_bounds = array<i64: 1, 128>}, {pipeline_mode = #tpu.pipeline_mode<synchronous>, transform_indices = @transform_7, window_bounds = array<i64: 1, 128>}, {pipeline_mode = #tpu.pipeline_mode<synchronous>, transform_indices = @transform_8, window_bounds = array<i64: 128, 512>}, {pipeline_mode = #tpu.pipeline_mode<synchronous>, transform_indices = @transform_9, window_bounds = array<i64: 128, 512>}, {pipeline_mode = #tpu.pipeline_mode<synchronous>, transform_indices = @transform_10, window_bounds = array<i64: 128, 512>}, {pipeline_mode = #tpu.pipeline_mode<synchronous>, transform_indices = @transform_11, window_bounds = array<i64: 1, 512>}, {pipeline_mode = #tpu.pipeline_mode<synchronous>, transform_indices = @transform_12, window_bounds = array<i64: 8, 128>}, {pipeline_mode = #tpu.pipeline_mode<synchronous>, transform_indices = @transform_13, window_bounds = array<i64: 8, 128>}, {pipeline_mode = #tpu.pipeline_mode<synchronous>, transform_indices = @transform_14, window_bounds = array<i64: 8, 128>}]} {
    %c0 = arith.constant 0 : index
    %c0_0 = arith.constant 0 : index
    %c0_1 = arith.constant 0 : index
    %0 = vector.load %arg4[%c0, %c0_0, %c0_1] : memref<8x8x128xbf16, #tpu.memory_space<vmem>>, vector<8x8x128xbf16>
    %c0_i32 = arith.constant 0 : i32
    %1 = arith.cmpi eq, %arg0, %c0_i32 : i32
    %2 = arith.extui %1 : i1 to i32
    %c0_i32_2 = arith.constant 0 : i32
    %3 = arith.cmpi ne, %2, %c0_i32_2 : i32
    scf.if %3 {
      %cst_30 = arith.constant 0xFF800000 : f32
      %51 = vector.broadcast %cst_30 : f32 to vector<8x1xf32>
      %c0_31 = arith.constant 0 : index
      %c0_32 = arith.constant 0 : index
      %52 = vector.load %arg16[%c0_31, %c0_32] : memref<8x1xf32, #tpu.memory_space<vmem>>, vector<8x1xf32>
      tpu.vector_store %arg16[%c0_31, %c0_32], %51 {strides = array<i32>} : memref<8x1xf32, #tpu.memory_space<vmem>>, vector<8x1xf32>,
      %cst_33 = arith.constant 0.000000e+00 : f32
      %53 = vector.broadcast %cst_33 : f32 to vector<8x1xf32>
      %c0_34 = arith.constant 0 : index
      %c0_35 = arith.constant 0 : index
      %54 = vector.load %arg17[%c0_34, %c0_35] : memref<8x1xf32, #tpu.memory_space<vmem>>, vector<8x1xf32>
      tpu.vector_store %arg17[%c0_34, %c0_35], %53 {strides = array<i32>} : memref<8x1xf32, #tpu.memory_space<vmem>>, vector<8x1xf32>,
      %cst_36 = arith.constant 0.000000e+00 : f32
      %55 = vector.broadcast %cst_36 : f32 to vector<8x128xf32>
      %c0_37 = arith.constant 0 : index
      %c0_38 = arith.constant 0 : index
      %56 = vector.load %arg18[%c0_37, %c0_38] : memref<8x128xf32, #tpu.memory_space<vmem>>, vector<8x128xf32>
      tpu.vector_store %arg18[%c0_37, %c0_38], %55 {strides = array<i32>} : memref<8x128xf32, #tpu.memory_space<vmem>>, vector<8x128xf32>,
      %c0_39 = arith.constant 0 : index
      %c0_40 = arith.constant 0 : index
      %57 = vector.load %arg2[%c0_39, %c0_40] : memref<8x128xf32, #tpu.memory_space<vmem>>, vector<8x128xf32>
      %58 = arith.truncf %57 : vector<8x128xf32> to vector<8x128xbf16>
      %c0_41 = arith.constant 0 : index
      %c0_42 = arith.constant 0 : index
      %59 = vector.load %arg5[%c0_41, %c0_42] : memref<128x128xbf16, #tpu.memory_space<vmem>>, vector<128x128xbf16>
      %cst_43 = arith.constant dense<0.000000e+00> : vector<8x128xf32>
      %60 = tpu.matmul %58, %59, %cst_43 {dimension_numbers = #tpu.dot_dimension_numbers<[1], [0], [0], [1], [0, 0, 1, 1], [], []>} : vector<8x128xbf16>, vector<128x128xbf16>, vector<8x128xf32> -> vector<8x128xf32>
      %c0_44 = arith.constant 0 : index
      %c0_45 = arith.constant 0 : index
      %61 = vector.load %arg19[%c0_44, %c0_45] : memref<8x128xf32, #tpu.memory_space<vmem>>, vector<8x128xf32>
      tpu.vector_store %arg19[%c0_44, %c0_45], %60 {strides = array<i32>} : memref<8x128xf32, #tpu.memory_space<vmem>>, vector<8x128xf32>,
    } else {
    }
    %4 = vector.shape_cast %0 : vector<8x8x128xbf16> to vector<64x128xbf16>
    %c0_3 = arith.constant 0 : index
    %c0_4 = arith.constant 0 : index
    %5 = vector.load %arg6[%c0_3, %c0_4] : memref<128x128xbf16, #tpu.memory_space<vmem>>, vector<128x128xbf16>
    %cst = arith.constant dense<0.000000e+00> : vector<64x128xf32>
    %6 = tpu.matmul %4, %5, %cst {dimension_numbers = #tpu.dot_dimension_numbers<[1], [0], [0], [1], [0, 0, 1, 1], [], []>} : vector<64x128xbf16>, vector<128x128xbf16>, vector<64x128xf32> -> vector<64x128xf32>
    %7 = vector.shape_cast %6 : vector<64x128xf32> to vector<8x8x128xf32>
    %c0_5 = arith.constant 0 : index
    %c0_6 = arith.constant 0 : index
    %8 = vector.load %arg19[%c0_5, %c0_6] : memref<8x128xf32, #tpu.memory_space<vmem>>, vector<8x128xf32>
    %9 = vector.shape_cast %8 : vector<8x128xf32> to vector<8x1x128xf32>
    %10 = vector.broadcast %9 : vector<8x1x128xf32> to vector<8x8x128xf32>
    %11 = arith.addf %7, %10 : vector<8x8x128xf32>
    %c0_7 = arith.constant 0 : index
    %c0_8 = arith.constant 0 : index
    %12 = vector.load %arg7[%c0_7, %c0_8] : memref<1x128xf32, #tpu.memory_space<vmem>>, vector<1x128xf32>
    %13 = vector.shape_cast %12 : vector<1x128xf32> to vector<1x1x128xf32>
    %14 = vector.broadcast %13 : vector<1x1x128xf32> to vector<8x8x128xf32>
    %15 = arith.addf %11, %14 : vector<8x8x128xf32>
    %cst_9 = arith.constant 0.000000e+00 : f32
    %16 = vector.broadcast %cst_9 : f32 to vector<8x8x128xf32>
    %17 = arith.maximumf %15, %16 : vector<8x8x128xf32>
    %c0_10 = arith.constant 0 : index
    %c0_11 = arith.constant 0 : index
    %18 = vector.load %arg8[%c0_10, %c0_11] : memref<1x128xf32, #tpu.memory_space<vmem>>, vector<1x128xf32>
    %19 = vector.shape_cast %18 : vector<1x128xf32> to vector<1x1x128xf32>
    %20 = vector.broadcast %19 : vector<1x1x128xf32> to vector<8x8x128xf32>
    %21 = arith.mulf %17, %20 : vector<8x8x128xf32>
    %cst_12 = arith.constant dense<0.000000e+00> : vector<8x8xf32>
    %22 = vector.multi_reduction <add>, %21, %cst_12 [2] : vector<8x8x128xf32> to vector<8x8xf32>
    %c0_13 = arith.constant 0 : index
    %c0_14 = arith.constant 0 : index
    %23 = vector.load %arg16[%c0_13, %c0_14] : memref<8x1xf32, #tpu.memory_space<vmem>>, vector<8x1xf32>
    %cst_15 = arith.constant dense<0xFF800000> : vector<8xf32>
    %24 = vector.multi_reduction <maximumf>, %22, %cst_15 [1] : vector<8x8xf32> to vector<8xf32>
    %25 = vector.shape_cast %24 : vector<8xf32> to vector<8x1xf32>
    %26 = arith.maximumf %23, %25 : vector<8x1xf32>
    %27 = arith.subf %23, %26 : vector<8x1xf32>
    %28 = math.exp %27 : vector<8x1xf32>
    %29 = vector.broadcast %26 : vector<8x1xf32> to vector<8x8xf32>
    %30 = arith.subf %22, %29 : vector<8x8xf32>
    %31 = math.exp %30 : vector<8x8xf32>
    %c0_16 = arith.constant 0 : index
    %c0_17 = arith.constant 0 : index
    %32 = vector.load %arg17[%c0_16, %c0_17] : memref<8x1xf32, #tpu.memory_space<vmem>>, vector<8x1xf32>
    %33 = arith.mulf %28, %32 : vector<8x1xf32>
    %cst_18 = arith.constant dense<0.000000e+00> : vector<8xf32>
    %34 = vector.multi_reduction <add>, %31, %cst_18 [1] : vector<8x8xf32> to vector<8xf32>
    %35 = vector.shape_cast %34 : vector<8xf32> to vector<8x1xf32>
    %36 = arith.addf %33, %35 : vector<8x1xf32>
    %c0_19 = arith.constant 0 : index
    %c0_20 = arith.constant 0 : index
    %37 = vector.load %arg17[%c0_19, %c0_20] : memref<8x1xf32, #tpu.memory_space<vmem>>, vector<8x1xf32>
    tpu.vector_store %arg17[%c0_19, %c0_20], %36 {strides = array<i32>} : memref<8x1xf32, #tpu.memory_space<vmem>>, vector<8x1xf32>,
    %c0_21 = arith.constant 0 : index
    %c0_22 = arith.constant 0 : index
    %38 = vector.load %arg18[%c0_21, %c0_22] : memref<8x128xf32, #tpu.memory_space<vmem>>, vector<8x128xf32>
    %39 = vector.broadcast %28 : vector<8x1xf32> to vector<8x128xf32>
    %40 = arith.mulf %39, %38 : vector<8x128xf32>
    %41 = arith.truncf %31 : vector<8x8xf32> to vector<8x8xbf16>
    %42 = vector.shape_cast %41 : vector<8x8xbf16> to vector<8x1x8xbf16>
    "tpu.trace_start"() <{level = 10 : i32, message = "bqs,bsh->bqh"}> : () -> ()
    %cst_23 = arith.constant dense<0.000000e+00> : vector<8x1x128xf32>
    %43 = tpu.matmul %42, %0, %cst_23 {dimension_numbers = #tpu.dot_dimension_numbers<[2], [1], [1], [2], [0, 0, 0, 1, 1, 2], [0], [0]>} : vector<8x1x8xbf16>, vector<8x8x128xbf16>, vector<8x1x128xf32> -> vector<8x1x128xf32>
    "tpu.trace_stop"() : () -> ()
    %44 = vector.shape_cast %43 : vector<8x1x128xf32> to vector<8x128xf32>
    %45 = arith.addf %40, %44 : vector<8x128xf32>
    %c0_24 = arith.constant 0 : index
    %c0_25 = arith.constant 0 : index
    %46 = vector.load %arg18[%c0_24, %c0_25] : memref<8x128xf32, #tpu.memory_space<vmem>>, vector<8x128xf32>
    tpu.vector_store %arg18[%c0_24, %c0_25], %45 {strides = array<i32>} : memref<8x128xf32, #tpu.memory_space<vmem>>, vector<8x128xf32>,
    %c0_26 = arith.constant 0 : index
    %c0_27 = arith.constant 0 : index
    %47 = vector.load %arg16[%c0_26, %c0_27] : memref<8x1xf32, #tpu.memory_space<vmem>>, vector<8x1xf32>
    tpu.vector_store %arg16[%c0_26, %c0_27], %26 {strides = array<i32>} : memref<8x1xf32, #tpu.memory_space<vmem>>, vector<8x1xf32>,
    %c0_i32_28 = arith.constant 0 : i32
    %48 = arith.cmpi eq, %arg0, %c0_i32_28 : i32
    %49 = arith.extui %48 : i1 to i32
    %c0_i32_29 = arith.constant 0 : i32
    %50 = arith.cmpi ne, %49, %c0_i32_29 : i32
    scf.if %50 {
      %c0_30 = arith.constant 0 : index
      %c0_31 = arith.constant 0 : index
      %51 = vector.load %arg17[%c0_30, %c0_31] : memref<8x1xf32, #tpu.memory_space<vmem>>, vector<8x1xf32>
      %52 = tpu.reciprocal %51 {approx = true} : vector<8x1xf32> -> vector<8x1xf32>
      %c0_32 = arith.constant 0 : index
      %c0_33 = arith.constant 0 : index
      %53 = vector.load %arg18[%c0_32, %c0_33] : memref<8x128xf32, #tpu.memory_space<vmem>>, vector<8x128xf32>
      %54 = vector.broadcast %52 : vector<8x1xf32> to vector<8x128xf32>
      %55 = arith.mulf %53, %54 : vector<8x128xf32>
      %56 = arith.truncf %55 : vector<8x128xf32> to vector<8x128xbf16>
      %c0_34 = arith.constant 0 : index
      %c0_35 = arith.constant 0 : index
      %57 = vector.load %arg1[%c0_34, %c0_35] : memref<8x128xbf16, #tpu.memory_space<vmem>>, vector<8x128xbf16>
      %c0_36 = arith.constant 0 : index
      %c0_37 = arith.constant 0 : index
      %58 = vector.load %arg9[%c0_36, %c0_37] : memref<128x512xbf16, #tpu.memory_space<vmem>>, vector<128x512xbf16>
      %cst_38 = arith.constant dense<0.000000e+00> : vector<8x512xf32>
      %59 = tpu.matmul %57, %58, %cst_38 {dimension_numbers = #tpu.dot_dimension_numbers<[1], [0], [0], [1], [0, 0, 1, 1], [], []>} : vector<8x128xbf16>, vector<128x512xbf16>, vector<8x512xf32> -> vector<8x512xf32>
      %c0_39 = arith.constant 0 : index
      %c0_40 = arith.constant 0 : index
      %60 = vector.load %arg10[%c0_39, %c0_40] : memref<128x512xbf16, #tpu.memory_space<vmem>>, vector<128x512xbf16>
      %cst_41 = arith.constant dense<0.000000e+00> : vector<8x512xf32>
      %61 = tpu.matmul %56, %60, %cst_41 {dimension_numbers = #tpu.dot_dimension_numbers<[1], [0], [0], [1], [0, 0, 1, 1], [], []>} : vector<8x128xbf16>, vector<128x512xbf16>, vector<8x512xf32> -> vector<8x512xf32>
      %62 = arith.addf %59, %61 : vector<8x512xf32>
      %c0_42 = arith.constant 0 : index
      %c0_43 = arith.constant 0 : index
      %63 = vector.load %arg2[%c0_42, %c0_43] : memref<8x128xf32, #tpu.memory_space<vmem>>, vector<8x128xf32>
      %64 = arith.truncf %63 : vector<8x128xf32> to vector<8x128xbf16>
      %c0_44 = arith.constant 0 : index
      %c0_45 = arith.constant 0 : index
      %65 = vector.load %arg11[%c0_44, %c0_45] : memref<128x512xbf16, #tpu.memory_space<vmem>>, vector<128x512xbf16>
      %cst_46 = arith.constant dense<0.000000e+00> : vector<8x512xf32>
      %66 = tpu.matmul %64, %65, %cst_46 {dimension_numbers = #tpu.dot_dimension_numbers<[1], [0], [0], [1], [0, 0, 1, 1], [], []>} : vector<8x128xbf16>, vector<128x512xbf16>, vector<8x512xf32> -> vector<8x512xf32>
      %67 = arith.addf %62, %66 : vector<8x512xf32>
      %c0_47 = arith.constant 0 : index
      %c0_48 = arith.constant 0 : index
      %68 = vector.load %arg12[%c0_47, %c0_48] : memref<1x512xf32, #tpu.memory_space<vmem>>, vector<1x512xf32>
      %69 = vector.broadcast %68 : vector<1x512xf32> to vector<8x512xf32>
      %70 = arith.addf %67, %69 : vector<8x512xf32>
      %71 = vector.extract_strided_slice %70 {offsets = [0, 0], sizes = [8, 128], strides = [1, 1]} : vector<8x512xf32> to vector<8x128xf32>
      %72 = arith.negf %71 : vector<8x128xf32>
      %73 = math.exp %72 : vector<8x128xf32>
      %cst_49 = arith.constant 1.000000e+00 : f32
      %74 = vector.broadcast %cst_49 : f32 to vector<8x128xf32>
      %75 = arith.addf %74, %73 : vector<8x128xf32>
      %76 = arith.divf %74, %75 : vector<8x128xf32>
      %77 = vector.extract_strided_slice %70 {offsets = [0, 128], sizes = [8, 128], strides = [1, 1]} : vector<8x512xf32> to vector<8x128xf32>
      %78 = arith.negf %77 : vector<8x128xf32>
      %79 = math.exp %78 : vector<8x128xf32>
      %cst_50 = arith.constant 1.000000e+00 : f32
      %80 = vector.broadcast %cst_50 : f32 to vector<8x128xf32>
      %81 = arith.addf %80, %79 : vector<8x128xf32>
      %82 = arith.divf %80, %81 : vector<8x128xf32>
      %83 = vector.extract_strided_slice %70 {offsets = [0, 256], sizes = [8, 128], strides = [1, 1]} : vector<8x512xf32> to vector<8x128xf32>
      %84 = math.tanh %83 : vector<8x128xf32>
      %85 = vector.extract_strided_slice %70 {offsets = [0, 384], sizes = [8, 128], strides = [1, 1]} : vector<8x512xf32> to vector<8x128xf32>
      %86 = arith.negf %85 : vector<8x128xf32>
      %87 = math.exp %86 : vector<8x128xf32>
      %cst_51 = arith.constant 1.000000e+00 : f32
      %88 = vector.broadcast %cst_51 : f32 to vector<8x128xf32>
      %89 = arith.addf %88, %87 : vector<8x128xf32>
      %90 = arith.divf %88, %89 : vector<8x128xf32>
      %c0_52 = arith.constant 0 : index
      %c0_53 = arith.constant 0 : index
      %91 = vector.load %arg3[%c0_52, %c0_53] : memref<8x128xf32, #tpu.memory_space<vmem>>, vector<8x128xf32>
      %92 = arith.mulf %82, %91 : vector<8x128xf32>
      %93 = arith.mulf %76, %84 : vector<8x128xf32>
      %94 = arith.addf %92, %93 : vector<8x128xf32>
      %95 = math.tanh %94 : vector<8x128xf32>
      %96 = arith.mulf %90, %95 : vector<8x128xf32>
      %c0_54 = arith.constant 0 : index
      %c0_55 = arith.constant 0 : index
      %97 = vector.load %arg13[%c0_54, %c0_55] : memref<8x128xf32, #tpu.memory_space<vmem>>, vector<8x128xf32>
      tpu.vector_store %arg13[%c0_54, %c0_55], %96 {strides = array<i32>} : memref<8x128xf32, #tpu.memory_space<vmem>>, vector<8x128xf32>,
      %c0_56 = arith.constant 0 : index
      %c0_57 = arith.constant 0 : index
      %98 = vector.load %arg14[%c0_56, %c0_57] : memref<8x128xf32, #tpu.memory_space<vmem>>, vector<8x128xf32>
      tpu.vector_store %arg14[%c0_56, %c0_57], %94 {strides = array<i32>} : memref<8x128xf32, #tpu.memory_space<vmem>>, vector<8x128xf32>,
      %99 = arith.truncf %96 : vector<8x128xf32> to vector<8x128xbf16>
      %c0_58 = arith.constant 0 : index
      %c0_59 = arith.constant 0 : index
      %100 = vector.load %arg15[%c0_58, %c0_59] : memref<8x128xbf16, #tpu.memory_space<vmem>>, vector<8x128xbf16>
      tpu.vector_store %arg15[%c0_58, %c0_59], %99 {strides = array<i32>} : memref<8x128xbf16, #tpu.memory_space<vmem>>, vector<8x128xbf16>,
    } else {
    }
    return
  }
  func.func @transform_0(%arg0: i32) -> (i32, i32) {
    %c0_i32 = arith.constant 0 : i32
    %c0_i32_0 = arith.constant 0 : i32
    %c0_i32_1 = arith.constant 0 : i32
    return %c0_i32, %c0_i32_0 : i32, i32
  }
  func.func @transform_1(%arg0: i32) -> (i32, i32) {
    %c0_i32 = arith.constant 0 : i32
    %c0_i32_0 = arith.constant 0 : i32
    %c0_i32_1 = arith.constant 0 : i32
    return %c0_i32, %c0_i32_0 : i32, i32
  }
  func.func @transform_2(%arg0: i32) -> (i32, i32) {
    %c0_i32 = arith.constant 0 : i32
    %c0_i32_0 = arith.constant 0 : i32
    %c0_i32_1 = arith.constant 0 : i32
    return %c0_i32, %c0_i32_0 : i32, i32
  }
  func.func @transform_3(%arg0: i32) -> (i32, i32, i32) {
    %c0_i32 = arith.constant 0 : i32
    %c0_i32_0 = arith.constant 0 : i32
    %c0_i32_1 = arith.constant 0 : i32
    return %c0_i32, %arg0, %c0_i32_0 : i32, i32, i32
  }
  func.func @transform_4(%arg0: i32) -> (i32, i32) {
    %c0_i32 = arith.constant 0 : i32
    %c0_i32_0 = arith.constant 0 : i32
    %c0_i32_1 = arith.constant 0 : i32
    return %c0_i32, %c0_i32_0 : i32, i32
  }
  func.func @transform_5(%arg0: i32) -> (i32, i32) {
    %c0_i32 = arith.constant 0 : i32
    %c0_i32_0 = arith.constant 0 : i32
    %c0_i32_1 = arith.constant 0 : i32
    return %c0_i32, %c0_i32_0 : i32, i32
  }
  func.func @transform_6(%arg0: i32) -> (i32, i32) {
    %c0_i32 = arith.constant 0 : i32
    %c0_i32_0 = arith.constant 0 : i32
    %c0_i32_1 = arith.constant 0 : i32
    return %c0_i32, %c0_i32_0 : i32, i32
  }
  func.func @transform_7(%arg0: i32) -> (i32, i32) {
    %c0_i32 = arith.constant 0 : i32
    %c0_i32_0 = arith.constant 0 : i32
    %c0_i32_1 = arith.constant 0 : i32
    return %c0_i32, %c0_i32_0 : i32, i32
  }
  func.func @transform_8(%arg0: i32) -> (i32, i32) {
    %c0_i32 = arith.constant 0 : i32
    %c0_i32_0 = arith.constant 0 : i32
    %c0_i32_1 = arith.constant 0 : i32
    return %c0_i32, %c0_i32_0 : i32, i32
  }
  func.func @transform_9(%arg0: i32) -> (i32, i32) {
    %c0_i32 = arith.constant 0 : i32
    %c0_i32_0 = arith.constant 0 : i32
    %c0_i32_1 = arith.constant 0 : i32
    return %c0_i32, %c0_i32_0 : i32, i32
  }
  func.func @transform_10(%arg0: i32) -> (i32, i32) {
    %c0_i32 = arith.constant 0 : i32
    %c0_i32_0 = arith.constant 0 : i32
    %c0_i32_1 = arith.constant 0 : i32
    return %c0_i32, %c0_i32_0 : i32, i32
  }
  func.func @transform_11(%arg0: i32) -> (i32, i32) {
    %c0_i32 = arith.constant 0 : i32
    %c0_i32_0 = arith.constant 0 : i32
    %c0_i32_1 = arith.constant 0 : i32
    return %c0_i32, %c0_i32_0 : i32, i32
  }
  func.func @transform_12(%arg0: i32) -> (i32, i32) {
    %c0_i32 = arith.constant 0 : i32
    %c0_i32_0 = arith.constant 0 : i32
    %c0_i32_1 = arith.constant 0 : i32
    return %c0_i32, %c0_i32_0 : i32, i32
  }
  func.func @transform_13(%arg0: i32) -> (i32, i32) {
    %c0_i32 = arith.constant 0 : i32
    %c0_i32_0 = arith.constant 0 : i32
    %c0_i32_1 = arith.constant 0 : i32
    return %c0_i32, %c0_i32_0 : i32, i32
  }
  func.func @transform_14(%arg0: i32) -> (i32, i32) {
    %c0_i32 = arith.constant 0 : i32
    %c0_i32_0 = arith.constant 0 : i32
    %c0_i32_1 = arith.constant 0 : i32
    return %c0_i32, %c0_i32_0 : i32, i32
  }
}

</mosaic_0001>

<llo_original>
// kernel: tpu_custom_call.1
$region0: #{tpu_custom_call.1}
  #allocation0 [shape = 'u32[]', space=smem, size = 0x4, offset = 0x4, fixed_abs, tag = 'smem constant byte address 0x4 - core index']
  #allocation1 [shape = 'u32[72,128]{1,0:T(1,128)}', space=vmem, size = 0x9000, scoped, tag = 'internal scratch']
  #allocation2 [shape = 'f32[8,1]{1,0:T(8,128)}', space=vmem, size = 0x1000, scoped, tag = 'scratch operand']
  #allocation3 [shape = 'f32[8,1]{1,0:T(8,128)}', space=vmem, size = 0x1000, scoped, tag = 'scratch operand']
  #allocation4 [shape = 'f32[8,128]{1,0:T(8,128)}', space=vmem, size = 0x1000, scoped, tag = 'scratch operand']
  #allocation5 [shape = 'f32[8,128]{1,0:T(8,128)}', space=vmem, size = 0x1000, scoped, tag = 'scratch operand']
  %s0 = inlined_call_operand.hbm [shape: bf16[8,128], index: 0, kind: input, shape index: {}]
  %s1 = inlined_call_operand.hbm [shape: f32[8,128], index: 1, kind: input, shape index: {}]
  %s2 = inlined_call_operand.hbm [shape: f32[8,128], index: 2, kind: input, shape index: {}]
  %s3 = inlined_call_operand.hbm [shape: bf16[8,8,128], index: 3, kind: input, shape index: {}]
  %s4 = inlined_call_operand.hbm [shape: bf16[128,128], index: 4, kind: input, shape index: {}]
  %s5 = inlined_call_operand.hbm [shape: bf16[128,128], index: 5, kind: input, shape index: {}]
  %s6 = inlined_call_operand.vmem [shape: f32[1,128], index: 6, kind: input, shape index: {}]
  %s7 = inlined_call_operand.vmem [shape: f32[1,128], index: 7, kind: input, shape index: {}]
  %s8 = inlined_call_operand.hbm [shape: bf16[128,512], index: 8, kind: input, shape index: {}]
  %s9 = inlined_call_operand.hbm [shape: bf16[128,512], index: 9, kind: input, shape index: {}]
  %s10 = inlined_call_operand.hbm [shape: bf16[128,512], index: 10, kind: input, shape index: {}]
  %s11 = inlined_call_operand.vmem [shape: f32[1,512], index: 11, kind: input, shape index: {}]
  %s12 = inlined_call_operand.hbm [shape: f32[8,128], index: 12, kind: output, shape index: {0}]
  %s13 = inlined_call_operand.hbm [shape: f32[8,128], index: 13, kind: output, shape index: {1}]
  %s14 = inlined_call_operand.hbm [shape: bf16[8,128], index: 14, kind: output, shape index: {2}]
  %15 = xla_tuple %s12, %s13, %s14
  %s16 = sld [smem:[#allocation0]]
  $region118: #{tpu_custom_call.1} parent=0
    _
  %s18 = ssub.s32 1, %s16
  %s19 = scalar_select 0, %s18, %s16
  $region1: #{tpu_custom_call.1} parent=0
    #allocation6 [shape = 'u8[2048]{0}', space=vmem, size = 0x800, scoped, tag = 'input window, operand 0, single buffered']
    #allocation7 [shape = 's32[1]{0}', space=sflag, size = 0x4, scoped, tag = 'scoped memory for tpu_custom_call.1']
    #allocation8 [shape = 's32[1]{0}', space=sflag, size = 0x4, scoped, tag = 'scoped memory for tpu_custom_call.1']
    #allocation9 [shape = 'u8[4096]{0}', space=vmem, size = 0x1000, scoped, tag = 'input window, operand 1, single buffered']
    #allocation10 [shape = 's32[1]{0}', space=sflag, size = 0x4, scoped, tag = 'scoped memory for tpu_custom_call.1']
    #allocation11 [shape = 'u8[4096]{0}', space=vmem, size = 0x1000, scoped, tag = 'input window, operand 2, single buffered']
    #allocation12 [shape = 'u8[16384]{0}', space=vmem, size = 0x4000, scoped, tag = 'input window, operand 3, single buffered']
    #allocation13 [shape = 's32[1]{0}', space=sflag, size = 0x4, scoped, tag = 'scoped memory for tpu_custom_call.1']
    #allocation14 [shape = 'u8[32768]{0}', space=vmem, size = 0x8000, scoped, tag = 'input window, operand 4, single buffered']
    #allocation15 [shape = 'u8[32768]{0}', space=vmem, size = 0x8000, scoped, tag = 'input window, operand 5, single buffered']
    #allocation16 [shape = 's32[1]{0}', space=sflag, size = 0x4, scoped, tag = 'scoped memory for tpu_custom_call.1']
    #allocation17 [shape = 'u8[131072]{0}', space=vmem, size = 0x20000, scoped, tag = 'input window, operand 8, single buffered']
    #allocation18 [shape = 'u8[131072]{0}', space=vmem, size = 0x20000, scoped, tag = 'input window, operand 9, single buffered']
    #allocation19 [shape = 's32[1]{0}', space=sflag, size = 0x4, scoped, tag = 'scoped memory for tpu_custom_call.1']
    #allocation20 [shape = 'u8[131072]{0}', space=vmem, size = 0x20000, scoped, tag = 'input window, operand 10, single buffered']
    #allocation21 [shape = 'u8[4096]{0}', space=vmem, size = 0x1000, scoped, tag = 'output window, operand 0, single buffered']
    #allocation22 [shape = 'u8[4096]{0}', space=vmem, size = 0x1000, scoped, tag = 'output window, operand 1, single buffered']
    #allocation23 [shape = 's32[1]{0}', space=sflag, size = 0x4, scoped, tag = 'scoped memory for tpu_custom_call.1']
    #allocation24 [shape = 'u8[2048]{0}', space=vmem, size = 0x800, scoped, tag = 'output window, operand 2, single buffered']
    %20 = vsyncpa [#allocation7], 0
    %21 = vsyncpa [#allocation10], 0
    %22 = vsyncpa [#allocation13], 0
    %23 = vsyncpa [#allocation16], 0
    %24 = vsyncpa [#allocation19], 0
    %25 = vsyncpa [#allocation8], 0
    %26 = vsyncpa [#allocation23], 0
    // Predicated region
    $region2: #{tpu_custom_call.1} parent=1 // pred_check
      _
    $region3: #{tpu_custom_call.1} parent=1 // pred_check_branch
      %28 = sbr.rel (0) target = $region5
    $region4: #{tpu_custom_call.1} parent=1 // pred_region
      %30 = vsyncadd [#allocation7], 0
      %s32 = sshll.u32 %s0, 4
      %s33 = int_to_ptr.hbm [resolvable:$true] %s32
      %s34 = sshll.u32 [#allocation6], 4
      %s35 = int_to_ptr.vmem [resolvable:$true] %s34
      %37 = dma.hbm_to_vmem [thread:$0]  %s33, 64, %s35, [#allocation7]
    $region5: #{tpu_custom_call.1} parent=1 // pred_fallthru
      _
    // Predicated region
    $region6: #{tpu_custom_call.1} parent=1 // pred_check
      _
    $region7: #{tpu_custom_call.1} parent=1 // pred_check_branch
      %39 = sbr.rel (0) target = $region9
    $region8: #{tpu_custom_call.1} parent=1 // pred_region
      %41 = vsyncadd [#allocation10], 0
      %s43 = sshll.u32 %s1, 4
      %s44 = int_to_ptr.hbm [resolvable:$true] %s43
      %s45 = sshll.u32 [#allocation9], 4
      %s46 = int_to_ptr.vmem [resolvable:$true] %s45
      %48 = dma.hbm_to_vmem [thread:$0]  %s44, 128, %s46, [#allocation10]
    $region9: #{tpu_custom_call.1} parent=1 // pred_fallthru
      _
    // Predicated region
    $region10: #{tpu_custom_call.1} parent=1 // pred_check
      _
    $region11: #{tpu_custom_call.1} parent=1 // pred_check_branch
      %50 = sbr.rel (0) target = $region13
    $region12: #{tpu_custom_call.1} parent=1 // pred_region
      %52 = vsyncadd [#allocation10], 0
      %s54 = sshll.u32 %s2, 4
      %s55 = int_to_ptr.hbm [resolvable:$true] %s54
      %s56 = sshll.u32 [#allocation11], 4
      %s57 = int_to_ptr.vmem [resolvable:$true] %s56
      %59 = dma.hbm_to_vmem [thread:$0]  %s55, 128, %s57, [#allocation10]
    $region13: #{tpu_custom_call.1} parent=1 // pred_fallthru
      _
    // Predicated region
    $region14: #{tpu_custom_call.1} parent=1 // pred_check
      _
    $region15: #{tpu_custom_call.1} parent=1 // pred_check_branch
      %61 = sbr.rel (0) target = $region17
    $region16: #{tpu_custom_call.1} parent=1 // pred_region
      %63 = vsyncadd [#allocation13], 0
      %s64 = sshll.u32 %s3, 4
      %s65 = int_to_ptr.hbm [resolvable:$true] %s64
      %s66 = sshll.u32 [#allocation12], 4
      %s67 = int_to_ptr.vmem [resolvable:$true] %s66
      %72 = dma.hbm_to_vmem [thread:$0]  %s65, 512, %s67, [#allocation13], 64, 64, 4
    $region17: #{tpu_custom_call.1} parent=1 // pred_fallthru
      _
    // Predicated region
    $region18: #{tpu_custom_call.1} parent=1 // pred_check
      _
    $region19: #{tpu_custom_call.1} parent=1 // pred_check_branch
      %74 = sbr.rel (0) target = $region21
    $region20: #{tpu_custom_call.1} parent=1 // pred_region
      %76 = vsyncadd [#allocation13], 0
      %s77 = sshll.u32 %s4, 4
      %s78 = int_to_ptr.hbm [resolvable:$true] %s77
      %s79 = sshll.u32 [#allocation14], 4
      %s80 = int_to_ptr.vmem [resolvable:$true] %s79
      %85 = dma.hbm_to_vmem [thread:$0]  %s78, 1024, %s80, [#allocation13], 64, 64, 4
    $region21: #{tpu_custom_call.1} parent=1 // pred_fallthru
      _
    // Predicated region
    $region22: #{tpu_custom_call.1} parent=1 // pred_check
      _
    $region23: #{tpu_custom_call.1} parent=1 // pred_check_branch
      %87 = sbr.rel (0) target = $region25
    $region24: #{tpu_custom_call.1} parent=1 // pred_region
      %89 = vsyncadd [#allocation16], 0
      %s90 = sshll.u32 %s5, 4
      %s91 = int_to_ptr.hbm [resolvable:$true] %s90
      %s92 = sshll.u32 [#allocation15], 4
      %s93 = int_to_ptr.vmem [resolvable:$true] %s92
      %98 = dma.hbm_to_vmem [thread:$0]  %s91, 1024, %s93, [#allocation16], 64, 64, 4
    $region25: #{tpu_custom_call.1} parent=1 // pred_fallthru
      _
    // Predicated region
    $region26: #{tpu_custom_call.1} parent=1 // pred_check
      _
    $region27: #{tpu_custom_call.1} parent=1 // pred_check_branch
      %100 = sbr.rel (0) target = $region29
    $region28: #{tpu_custom_call.1} parent=1 // pred_region
      _
    $region29: #{tpu_custom_call.1} parent=1 // pred_fallthru
      _
    // Predicated region
    $region30: #{tpu_custom_call.1} parent=1 // pred_check
      _
    $region31: #{tpu_custom_call.1} parent=1 // pred_check_branch
      %102 = sbr.rel (0) target = $region33
    $region32: #{tpu_custom_call.1} parent=1 // pred_region
      _
    $region33: #{tpu_custom_call.1} parent=1 // pred_fallthru
      _
    // Predicated region
    $region34: #{tpu_custom_call.1} parent=1 // pred_check
      _
    $region35: #{tpu_custom_call.1} parent=1 // pred_check_branch
      %104 = sbr.rel (0) target = $region37
    $region36: #{tpu_custom_call.1} parent=1 // pred_region
      %106 = vsyncadd [#allocation16], 0
      %s107 = sshll.u32 %s8, 4
      %s108 = int_to_ptr.hbm [resolvable:$true] %s107
      %s109 = sshll.u32 [#allocation17], 4
      %s110 = int_to_ptr.vmem [resolvable:$true] %s109
      %115 = dma.hbm_to_vmem [thread:$0]  %s108, 4096, %s110, [#allocation16], 256, 256, 16
    $region37: #{tpu_custom_call.1} parent=1 // pred_fallthru
      _
    // Predicated region
    $region38: #{tpu_custom_call.1} parent=1 // pred_check
      _
    $region39: #{tpu_custom_call.1} parent=1 // pred_check_branch
      %117 = sbr.rel (0) target = $region41
    $region40: #{tpu_custom_call.1} parent=1 // pred_region
      %119 = vsyncadd [#allocation19], 0
      %s120 = sshll.u32 %s9, 4
      %s121 = int_to_ptr.hbm [resolvable:$true] %s120
      %s122 = sshll.u32 [#allocation18], 4
      %s123 = int_to_ptr.vmem [resolvable:$true] %s122
      %128 = dma.hbm_to_vmem [thread:$0]  %s121, 4096, %s123, [#allocation19], 256, 256, 16
    $region41: #{tpu_custom_call.1} parent=1 // pred_fallthru
      _
    // Predicated region
    $region42: #{tpu_custom_call.1} parent=1 // pred_check
      _
    $region43: #{tpu_custom_call.1} parent=1 // pred_check_branch
      %130 = sbr.rel (0) target = $region45
    $region44: #{tpu_custom_call.1} parent=1 // pred_region
      %132 = vsyncadd [#allocation19], 0
      %s133 = sshll.u32 %s10, 4
      %s134 = int_to_ptr.hbm [resolvable:$true] %s133
      %s135 = sshll.u32 [#allocation20], 4
      %s136 = int_to_ptr.vmem [resolvable:$true] %s135
      %141 = dma.hbm_to_vmem [thread:$0]  %s134, 4096, %s136, [#allocation19], 256, 256, 16
    $region45: #{tpu_custom_call.1} parent=1 // pred_fallthru
      _
    // Predicated region
    $region46: #{tpu_custom_call.1} parent=1 // pred_check
      _
    $region47: #{tpu_custom_call.1} parent=1 // pred_check_branch
      %143 = sbr.rel (0) target = $region49
    $region48: #{tpu_custom_call.1} parent=1 // pred_region
      _
    $region49: #{tpu_custom_call.1} parent=1 // pred_fallthru
      _
    // Predicated region
    $region50: #{tpu_custom_call.1} parent=1 // pred_check
      _
    $region51: #{tpu_custom_call.1} parent=1 // pred_check_branch
      %145 = sbr.rel (0) target = $region53
    $region52: #{tpu_custom_call.1} parent=1 // pred_region
      %147 = dma.done [#allocation7], 64
    $region53: #{tpu_custom_call.1} parent=1 // pred_fallthru
      _
    // Predicated region
    $region54: #{tpu_custom_call.1} parent=1 // pred_check
      _
    $region55: #{tpu_custom_call.1} parent=1 // pred_check_branch
      %149 = sbr.rel (0) target = $region57
    $region56: #{tpu_custom_call.1} parent=1 // pred_region
      %151 = dma.done [#allocation10], 128
    $region57: #{tpu_custom_call.1} parent=1 // pred_fallthru
      _
    // Predicated region
    $region58: #{tpu_custom_call.1} parent=1 // pred_check
      _
    $region59: #{tpu_custom_call.1} parent=1 // pred_check_branch
      %153 = sbr.rel (0) target = $region61
    $region60: #{tpu_custom_call.1} parent=1 // pred_region
      %155 = dma.done [#allocation10], 128
    $region61: #{tpu_custom_call.1} parent=1 // pred_fallthru
      _
    // Predicated region
    $region62: #{tpu_custom_call.1} parent=1 // pred_check
      _
    $region63: #{tpu_custom_call.1} parent=1 // pred_check_branch
      %157 = sbr.rel (0) target = $region65
    $region64: #{tpu_custom_call.1} parent=1 // pred_region
      %159 = dma.done [#allocation13], 512
    $region65: #{tpu_custom_call.1} parent=1 // pred_fallthru
      _
    // Predicated region
    $region66: #{tpu_custom_call.1} parent=1 // pred_check
      _
    $region67: #{tpu_custom_call.1} parent=1 // pred_check_branch
      %161 = sbr.rel (0) target = $region69
    $region68: #{tpu_custom_call.1} parent=1 // pred_region
      %163 = dma.done [#allocation13], 1024
    $region69: #{tpu_custom_call.1} parent=1 // pred_fallthru
      _
    // Predicated region
    $region70: #{tpu_custom_call.1} parent=1 // pred_check
      _
    $region71: #{tpu_custom_call.1} parent=1 // pred_check_branch
      %165 = sbr.rel (0) target = $region73
    $region72: #{tpu_custom_call.1} parent=1 // pred_region
      %167 = dma.done [#allocation16], 1024
    $region73: #{tpu_custom_call.1} parent=1 // pred_fallthru
      _
    // Predicated region
    $region74: #{tpu_custom_call.1} parent=1 // pred_check
      _
    $region75: #{tpu_custom_call.1} parent=1 // pred_check_branch
      %169 = sbr.rel (0) target = $region77
    $region76: #{tpu_custom_call.1} parent=1 // pred_region
      %171 = dma.done [#allocation16], 4096
    $region77: #{tpu_custom_call.1} parent=1 // pred_fallthru
      _
    // Predicated region
    $region78: #{tpu_custom_call.1} parent=1 // pred_check
      _
    $region79: #{tpu_custom_call.1} parent=1 // pred_check_branch
      %173 = sbr.rel (0) target = $region81
    $region80: #{tpu_custom_call.1} parent=1 // pred_region
      %175 = dma.done [#allocation19], 4096
    $region81: #{tpu_custom_call.1} parent=1 // pred_fallthru
      _
    // Predicated region
    $region82: #{tpu_custom_call.1} parent=1 // pred_check
      _
    $region83: #{tpu_custom_call.1} parent=1 // pred_check_branch
      %177 = sbr.rel (0) target = $region85
    $region84: #{tpu_custom_call.1} parent=1 // pred_region
      %179 = dma.done [#allocation19], 4096
    $region85: #{tpu_custom_call.1} parent=1 // pred_fallthru
      _
    %v181 = vld [vmem:[#allocation12] sm:$0xf]
    %v182 = vld [vmem:[#allocation12 + $0x4] sm:$0xf]
    %v183 = vld [vmem:[#allocation12 + $0x8] sm:$0xf]
    %v184 = vld [vmem:[#allocation12 + $0xc] sm:$0xf]
    %v185 = vld [vmem:[#allocation12 + $0x10] sm:$0xf]
    %v186 = vld [vmem:[#allocation12 + $0x14] sm:$0xf]
    %v187 = vld [vmem:[#allocation12 + $0x18] sm:$0xf]
    %v188 = vld [vmem:[#allocation12 + $0x1c] sm:$0xf]
    %p189 = scmp.eq.s32.totalorder 0, 0
    // Predicated region
    $region86: #{tpu_custom_call.1} parent=1 // pred_check
      %p190 = pneg %p189
    $region87: #{tpu_custom_call.1} parent=1 // pred_check_branch
      %192 = sbr.rel (%p190) target = $region89
    $region88: #{tpu_custom_call.1} parent=1 // pred_region
      %vm193 = vcmask 7168
      %194 = vst.msk [vmem:[#allocation2] sm:$0xff] %vm193, -inf
      %195 = vst.msk [vmem:[#allocation3] sm:$0xff] %vm193, 0.0
      %196 = vst [vmem:[#allocation4] sm:$0xff] 0.0
      %v197 = vld [vmem:[#allocation9] sm:$0xff]
      %v198 = vpack.c.bf16 %v197, %v197
      %v199 = vld [vmem:[#allocation14] sm:$0xf]
      %v200 = vld [vmem:[#allocation14 + $0x4] sm:$0xf]
      %v201 = vld [vmem:[#allocation14 + $0x8] sm:$0xf]
      %v202 = vld [vmem:[#allocation14 + $0xc] sm:$0xf]
      %v203 = vld [vmem:[#allocation14 + $0x10] sm:$0xf]
      %v204 = vld [vmem:[#allocation14 + $0x14] sm:$0xf]
      %v205 = vld [vmem:[#allocation14 + $0x18] sm:$0xf]
      %v206 = vld [vmem:[#allocation14 + $0x1c] sm:$0xf]
      %v207 = vld [vmem:[#allocation14 + $0x20] sm:$0xf]
      %v208 = vld [vmem:[#allocation14 + $0x24] sm:$0xf]
      %v209 = vld [vmem:[#allocation14 + $0x28] sm:$0xf]
      %v210 = vld [vmem:[#allocation14 + $0x2c] sm:$0xf]
      %v211 = vld [vmem:[#allocation14 + $0x30] sm:$0xf]
      %v212 = vld [vmem:[#allocation14 + $0x34] sm:$0xf]
      %v213 = vld [vmem:[#allocation14 + $0x38] sm:$0xf]
      %v214 = vld [vmem:[#allocation14 + $0x3c] sm:$0xf]
      %v231 = vunpack.c.l.b16 %v199
      %v232 = vunpack.c.l.b16 %v200
      %v233 = vunpack.c.l.b16 %v201
      %v234 = vunpack.c.l.b16 %v202
      %v235 = vunpack.c.l.b16 %v203
      %v236 = vunpack.c.l.b16 %v204
      %v237 = vunpack.c.l.b16 %v205
      %v238 = vunpack.c.l.b16 %v206
      %v239 = vunpack.c.l.b16 %v207
      %v240 = vunpack.c.l.b16 %v208
      %v241 = vunpack.c.l.b16 %v209
      %v242 = vunpack.c.l.b16 %v210
      %v243 = vunpack.c.l.b16 %v211
      %v244 = vunpack.c.l.b16 %v212
      %v245 = vunpack.c.l.b16 %v213
      %v246 = vunpack.c.l.b16 %v214
      %v247 = vpack.c.b16 %v232, %v231
      %v248 = vpack.c.b16 %v234, %v233
      %v249 = vpack.c.b16 %v236, %v235
      %v250 = vpack.c.b16 %v238, %v237
      %v251 = vpack.c.b16 %v240, %v239
      %v252 = vpack.c.b16 %v242, %v241
      %v253 = vpack.c.b16 %v244, %v243
      %v254 = vpack.c.b16 %v246, %v245
      %263 = vmatpush.bf16.msra.mxu0 %v254
      %264 = vmatpush.bf16.msra.mxu0 %v253
      %265 = vmatpush.bf16.msra.mxu0 %v252
      %266 = vmatpush.bf16.msra.mxu0 %v251
      %267 = vmatpush.bf16.msra.mxu0 %v250
      %268 = vmatpush.bf16.msra.mxu0 %v249
      %269 = vmatpush.bf16.msra.mxu0 %v248
      %270 = vmatpush.bf16.msra.mxu0 %v247
      %271 = vmatmul.bf16.gmra.mxu0 %v198
      %v272 = vpop.f32.mrf.mxu0
      %v273 = vadd.f32 0.0, %v272
      %v274 = vpop.f32.mrf.mxu0
      %275 = vdwg.mxu0
      %276 = vst [vmem:[#allocation5] sm:$0xff] %v273
    $region89: #{tpu_custom_call.1} parent=1 // pred_fallthru
      _
    %v277 = vld [vmem:[#allocation15] sm:$0xf]
    %v278 = vld [vmem:[#allocation15 + $0x4] sm:$0xf]
    %v279 = vld [vmem:[#allocation15 + $0x8] sm:$0xf]
    %v280 = vld [vmem:[#allocation15 + $0xc] sm:$0xf]
    %v281 = vld [vmem:[#allocation15 + $0x10] sm:$0xf]
    %v282 = vld [vmem:[#allocation15 + $0x14] sm:$0xf]
    %v283 = vld [vmem:[#allocation15 + $0x18] sm:$0xf]
    %v284 = vld [vmem:[#allocation15 + $0x1c] sm:$0xf]
    %v285 = vld [vmem:[#allocation15 + $0x20] sm:$0xf]
    %v286 = vld [vmem:[#allocation15 + $0x24] sm:$0xf]
    %v287 = vld [vmem:[#allocation15 + $0x28] sm:$0xf]
    %v288 = vld [vmem:[#allocation15 + $0x2c] sm:$0xf]
    %v289 = vld [vmem:[#allocation15 + $0x30] sm:$0xf]
    %v290 = vld [vmem:[#allocation15 + $0x34] sm:$0xf]
    %v291 = vld [vmem:[#allocation15 + $0x38] sm:$0xf]
    %v292 = vld [vmem:[#allocation15 + $0x3c] sm:$0xf]
    %v301 = vunpack.c.l.b16 %v181
    %v302 = vunpack.c.l.b16 %v182
    %v303 = vunpack.c.l.b16 %v183
    %v304 = vunpack.c.l.b16 %v184
    %v305 = vunpack.c.l.b16 %v185
    %v306 = vunpack.c.l.b16 %v186
    %v307 = vunpack.c.l.b16 %v187
    %v308 = vunpack.c.l.b16 %v188
    %v309 = vpack.c.b16 %v302, %v301
    %v310 = vpack.c.b16 %v304, %v303
    %v311 = vpack.c.b16 %v306, %v305
    %v312 = vpack.c.b16 %v308, %v307
    %v333 = vunpack.c.l.b16 %v277
    %v334 = vunpack.c.l.b16 %v278
    %v335 = vunpack.c.l.b16 %v279
    %v336 = vunpack.c.l.b16 %v280
    %v337 = vunpack.c.l.b16 %v281
    %v338 = vunpack.c.l.b16 %v282
    %v339 = vunpack.c.l.b16 %v283
    %v340 = vunpack.c.l.b16 %v284
    %v341 = vunpack.c.l.b16 %v285
    %v342 = vunpack.c.l.b16 %v286
    %v343 = vunpack.c.l.b16 %v287
    %v344 = vunpack.c.l.b16 %v288
    %v345 = vunpack.c.l.b16 %v289
    %v346 = vunpack.c.l.b16 %v290
    %v347 = vunpack.c.l.b16 %v291
    %v348 = vunpack.c.l.b16 %v292
    %v349 = vpack.c.b16 %v334, %v333
    %v350 = vpack.c.b16 %v336, %v335
    %v351 = vpack.c.b16 %v338, %v337
    %v352 = vpack.c.b16 %v340, %v339
    %v353 = vpack.c.b16 %v342, %v341
    %v354 = vpack.c.b16 %v344, %v343
    %v355 = vpack.c.b16 %v346, %v345
    %v356 = vpack.c.b16 %v348, %v347
    %365 = vmatpush.bf16.msra.mxu0 %v356
    %366 = vmatpush.bf16.msra.mxu0 %v355
    %367 = vmatpush.bf16.msra.mxu0 %v354
    %368 = vmatpush.bf16.msra.mxu0 %v353
    %369 = vmatpush.bf16.msra.mxu0 %v352
    %370 = vmatpush.bf16.msra.mxu0 %v351
    %371 = vmatpush.bf16.msra.mxu0 %v350
    %372 = vmatpush.bf16.msra.mxu0 %v349
    %373 = vmatmul.bf16.gmra.mxu0 %v309
    %v374 = vpop.f32.mrf.mxu0
    %v375 = vadd.f32 0.0, %v374
    %v376 = vpop.f32.mrf.mxu0
    %v377 = vadd.f32 0.0, %v376
    %378 = vmatmul.bf16.gmra.mxu0 %v310
    %v379 = vpop.f32.mrf.mxu0
    %v380 = vadd.f32 0.0, %v379
    %v381 = vpop.f32.mrf.mxu0
    %v382 = vadd.f32 0.0, %v381
    %383 = vmatmul.bf16.gmra.mxu0 %v311
    %v384 = vpop.f32.mrf.mxu0
    %v385 = vadd.f32 0.0, %v384
    %v386 = vpop.f32.mrf.mxu0
    %v387 = vadd.f32 0.0, %v386
    %388 = vmatmul.bf16.gmra.mxu0 %v312
    %v389 = vpop.f32.mrf.mxu0
    %v390 = vadd.f32 0.0, %v389
    %v391 = vpop.f32.mrf.mxu0
    %v392 = vadd.f32 0.0, %v391
    %393 = vdwg.mxu0
    %v394 = vld [vmem:[#allocation5] sm:$0xff]
    %v396 = vrot.slane %v394, 1
    %v397 = vrot.slane %v394, 2
    %v398 = vrot.slane %v394, 3
    %v399 = vrot.slane %v394, 4
    %v400 = vrot.slane %v394, 5
    %v401 = vrot.slane %v394, 6
    %v402 = vrot.slane %v394, 7
    %v403 = vperm.slane %v394, 0
    %v404 = vperm.slane %v396, 0
    %v405 = vperm.slane %v397, 0
    %v406 = vperm.slane %v398, 0
    %v407 = vperm.slane %v399, 0
    %v408 = vperm.slane %v400, 0
    %v409 = vperm.slane %v401, 0
    %v410 = vperm.slane %v402, 0
    %v419 = vadd.f32 %v375, %v403
    %v420 = vadd.f32 %v377, %v404
    %v421 = vadd.f32 %v380, %v405
    %v422 = vadd.f32 %v382, %v406
    %v423 = vadd.f32 %v385, %v407
    %v424 = vadd.f32 %v387, %v408
    %v425 = vadd.f32 %v390, %v409
    %v426 = vadd.f32 %v392, %v410
    %v427 = vld [vmem:[%s6] sm:$0x1]
    %v429 = vperm.slane %v427, 0
    %v431 = vadd.f32 %v419, %v429
    %v432 = vadd.f32 %v420, %v429
    %v433 = vadd.f32 %v421, %v429
    %v434 = vadd.f32 %v422, %v429
    %v435 = vadd.f32 %v423, %v429
    %v436 = vadd.f32 %v424, %v429
    %v437 = vadd.f32 %v425, %v429
    %v438 = vadd.f32 %v426, %v429
    %v439 = vmax.f32 %v431, 0.0
    %v440 = vmax.f32 %v432, 0.0
    %v441 = vmax.f32 %v433, 0.0
    %v442 = vmax.f32 %v434, 0.0
    %v443 = vmax.f32 %v435, 0.0
    %v444 = vmax.f32 %v436, 0.0
    %v445 = vmax.f32 %v437, 0.0
    %v446 = vmax.f32 %v438, 0.0
    %v447 = vld [vmem:[%s7] sm:$0x1]
    %v449 = vperm.slane %v447, 0
    %v451 = vmul.f32 %v439, %v449
    %v452 = vmul.f32 %v440, %v449
    %v453 = vmul.f32 %v441, %v449
    %v454 = vmul.f32 %v442, %v449
    %v455 = vmul.f32 %v443, %v449
    %v456 = vmul.f32 %v444, %v449
    %v457 = vmul.f32 %v445, %v449
    %v458 = vmul.f32 %v446, %v449
    %459 = vadd.xlane.f32.xlu0 %v451
    %v460 = vpop.xlane.xlu0 %459
    %461 = vadd.xlane.f32.xlu0 %v452
    %v462 = vpop.xlane.xlu0 %461
    %463 = vadd.xlane.f32.xlu0 %v453
    %v464 = vpop.xlane.xlu0 %463
    %465 = vadd.xlane.f32.xlu0 %v454
    %v466 = vpop.xlane.xlu0 %465
    %467 = vadd.xlane.f32.xlu0 %v455
    %v468 = vpop.xlane.xlu0 %467
    %469 = vadd.xlane.f32.xlu0 %v456
    %v470 = vpop.xlane.xlu0 %469
    %471 = vadd.xlane.f32.xlu0 %v457
    %v472 = vpop.xlane.xlu0 %471
    %473 = vadd.xlane.f32.xlu0 %v458
    %v474 = vpop.xlane.xlu0 %473
    %v475 = vld [vmem:[#allocation2] sm:$0xff]
    %v484 = vlaneseq
    %v485 = vand.u32 %v484, 127
    %v486 = vperm.slane %v460, %v485
    %v487 = vperm.slane %v462, %v485
    %v488 = vperm.slane %v464, %v485
    %v489 = vperm.slane %v466, %v485
    %v490 = vperm.slane %v468, %v485
    %v491 = vperm.slane %v470, %v485
    %v492 = vperm.slane %v472, %v485
    %v493 = vperm.slane %v474, %v485
    %vm494 = vcmask 1041409
    %v495 = vsel %vm494, %v487, %v486
    %vm496 = vcmask 1042434
    %v497 = vsel %vm496, %v488, %v495
    %vm498 = vcmask 1043459
    %v499 = vsel %vm498, %v489, %v497
    %vm500 = vcmask 1044484
    %v501 = vsel %vm500, %v490, %v499
    %vm502 = vcmask 1045509
    %v503 = vsel %vm502, %v491, %v501
    %vm504 = vcmask 1046534
    %v505 = vsel %vm504, %v492, %v503
    %vm506 = vcmask 1047559
    %v507 = vsel %vm506, %v493, %v505
    %vm509 = vcmask 64512
    %v510 = vsel %vm509, %v507, -inf
    %511 = vmax.xlane.f32.xlu0 %v510
    %v512 = vpop.xlane.xlu0 %511
    %v513 = vmax.f32 %v475, %v512
    %v514 = vsub.f32 %v475, %v513
    %v515 = vmul.f32 %v514, 1.442695
    %v516 = vpow.pop %v515
    %518 = vset.pattern.permute.xlu0 0
    %519 = vperm.xlu0 %518, %v513
    %v520 = vpop.permute.xlu0 %519
    %v521 = vperm.slane %v520, 0
    %v522 = vperm.slane %v520, 1
    %v523 = vperm.slane %v520, 2
    %v524 = vperm.slane %v520, 3
    %v525 = vperm.slane %v520, 4
    %v526 = vperm.slane %v520, 5
    %v527 = vperm.slane %v520, 6
    %v528 = vperm.slane %v520, 7
    %v537 = vsub.f32 %v460, %v521
    %v538 = vsub.f32 %v462, %v522
    %v539 = vsub.f32 %v464, %v523
    %v540 = vsub.f32 %v466, %v524
    %v541 = vsub.f32 %v468, %v525
    %v542 = vsub.f32 %v470, %v526
    %v543 = vsub.f32 %v472, %v527
    %v544 = vsub.f32 %v474, %v528
    %v545 = vmul.f32 %v537, 1.442695
    %v546 = vpow.pop %v545
    %v547 = vmul.f32 %v538, 1.442695
    %v548 = vpow.pop %v547
    %v549 = vmul.f32 %v539, 1.442695
    %v550 = vpow.pop %v549
    %v551 = vmul.f32 %v540, 1.442695
    %v552 = vpow.pop %v551
    %v553 = vmul.f32 %v541, 1.442695
    %v554 = vpow.pop %v553
    %v555 = vmul.f32 %v542, 1.442695
    %v556 = vpow.pop %v555
    %v557 = vmul.f32 %v543, 1.442695
    %v558 = vpow.pop %v557
    %v559 = vmul.f32 %v544, 1.442695
    %v560 = vpow.pop %v559
    %v561 = vld [vmem:[#allocation3] sm:$0xff]
    %v562 = vmul.f32 %v516, %v561
    %571 = vset.pattern.permute.xlu0 0
    %572 = vperm.xlu0 %571, %v546
    %v573 = vpop.permute.xlu0 %572
    %574 = vset.pattern.permute.xlu0 0
    %575 = vperm.xlu0 %574, %v548
    %v576 = vpop.permute.xlu0 %575
    %577 = vset.pattern.permute.xlu0 0
    %578 = vperm.xlu0 %577, %v550
    %v579 = vpop.permute.xlu0 %578
    %580 = vset.pattern.permute.xlu0 0
    %581 = vperm.xlu0 %580, %v552
    %v582 = vpop.permute.xlu0 %581
    %583 = vset.pattern.permute.xlu0 0
    %584 = vperm.xlu0 %583, %v554
    %v585 = vpop.permute.xlu0 %584
    %586 = vset.pattern.permute.xlu0 0
    %587 = vperm.xlu0 %586, %v556
    %v588 = vpop.permute.xlu0 %587
    %589 = vset.pattern.permute.xlu0 0
    %590 = vperm.xlu0 %589, %v558
    %v591 = vpop.permute.xlu0 %590
    %592 = vset.pattern.permute.xlu0 0
    %593 = vperm.xlu0 %592, %v560
    %v594 = vpop.permute.xlu0 %593
    %v595 = vperm.slane %v573, %v485
    %v596 = vperm.slane %v576, %v485
    %v597 = vperm.slane %v579, %v485
    %v598 = vperm.slane %v582, %v485
    %v599 = vperm.slane %v585, %v485
    %v600 = vperm.slane %v588, %v485
    %v601 = vperm.slane %v591, %v485
    %v602 = vperm.slane %v594, %v485
    %v603 = vsel %vm494, %v596, %v595
    %v604 = vsel %vm496, %v597, %v603
    %v605 = vsel %vm498, %v598, %v604
    %v606 = vsel %vm500, %v599, %v605
    %v607 = vsel %vm502, %v600, %v606
    %v608 = vsel %vm504, %v601, %v607
    %v609 = vsel %vm506, %v602, %v608
    %v611 = vsel %vm509, %v609, 0.0
    %612 = vadd.xlane.f32.xlu0 %v611
    %v613 = vpop.xlane.xlu0 %612
    %v614 = vadd.f32 %v562, %v613
    %vm615 = vcmask 7168
    %616 = vst.msk [vmem:[#allocation3] sm:$0xff] %vm615, %v614
    %v617 = vld [vmem:[#allocation4] sm:$0xff]
    %619 = vset.pattern.permute.xlu0 0
    %620 = vperm.xlu0 %619, %v516
    %v621 = vpop.permute.xlu0 %620
    %v623 = vmul.f32 %v621, %v617
    %v624 = vpack.c.bf16 %v546, %v546
    %v625 = vpack.c.bf16 %v548, %v548
    %v626 = vpack.c.bf16 %v550, %v550
    %v627 = vpack.c.bf16 %v552, %v552
    %v628 = vpack.c.bf16 %v554, %v554
    %v629 = vpack.c.bf16 %v556, %v556
    %v630 = vpack.c.bf16 %v558, %v558
    %v631 = vpack.c.bf16 %v560, %v560
    %v633 = vunpack.c.l.b16 %v624
    %v634 = vpack.c.b16 %v633, %v633
    %v635 = vunpack.c.l.b16 %v634
    %636 = vset.pattern.permute.xlu0 0
    %637 = vperm.xlu0 %636, %v635
    %v638 = vpop.permute.xlu0 %637
    %v639 = vperm.slane %v638, %v485
    %v640 = vpack.c.b16 %v639, %v639
    %v642 = vsel %vm509, %v640, 0
    %vm644 = vcmask 1043456
    %v646 = vsel %vm644, %v181, 0
    %648 = vmatpush.bf16.msra.mxu0 0
    %649 = vmatpush.bf16.msra.mxu0 0
    %650 = vmatpush.bf16.msra.mxu0 0
    %651 = vmatpush.bf16.msra.mxu0 0
    %652 = vmatpush.bf16.msra.mxu0 0
    %653 = vmatpush.bf16.msra.mxu0 0
    %654 = vmatpush.bf16.msra.mxu0 0
    %655 = vmatpush.bf16.msra.mxu0 %v646
    %656 = vmatmul.bf16.gmra.mxu0 %v642
    %v657 = vpop.f32.mrf.mxu0
    %v658 = vadd.f32 0.0, %v657
    %v659 = vpop.f32.mrf.mxu0
    %660 = vdwg.mxu0
    %v662 = vunpack.c.l.b16 %v625
    %v663 = vpack.c.b16 %v662, %v662
    %v664 = vunpack.c.l.b16 %v663
    %665 = vset.pattern.permute.xlu0 0
    %666 = vperm.xlu0 %665, %v664
    %v667 = vpop.permute.xlu0 %666
    %v668 = vperm.slane %v667, %v485
    %v669 = vpack.c.b16 %v668, %v668
    %v671 = vsel %vm509, %v669, 0
    %v674 = vsel %vm644, %v182, 0
    %676 = vmatpush.bf16.msra.mxu0 0
    %677 = vmatpush.bf16.msra.mxu0 0
    %678 = vmatpush.bf16.msra.mxu0 0
    %679 = vmatpush.bf16.msra.mxu0 0
    %680 = vmatpush.bf16.msra.mxu0 0
    %681 = vmatpush.bf16.msra.mxu0 0
    %682 = vmatpush.bf16.msra.mxu0 0
    %683 = vmatpush.bf16.msra.mxu0 %v674
    %684 = vmatmul.bf16.gmra.mxu0 %v671
    %v685 = vpop.f32.mrf.mxu0
    %v686 = vadd.f32 0.0, %v685
    %v687 = vpop.f32.mrf.mxu0
    %688 = vdwg.mxu0
    %v690 = vunpack.c.l.b16 %v626
    %v691 = vpack.c.b16 %v690, %v690
    %v692 = vunpack.c.l.b16 %v691
    %693 = vset.pattern.permute.xlu0 0
    %694 = vperm.xlu0 %693, %v692
    %v695 = vpop.permute.xlu0 %694
    %v696 = vperm.slane %v695, %v485
    %v697 = vpack.c.b16 %v696, %v696
    %v699 = vsel %vm509, %v697, 0
    %v702 = vsel %vm644, %v183, 0
    %704 = vmatpush.bf16.msra.mxu0 0
    %705 = vmatpush.bf16.msra.mxu0 0
    %706 = vmatpush.bf16.msra.mxu0 0
    %707 = vmatpush.bf16.msra.mxu0 0
    %708 = vmatpush.bf16.msra.mxu0 0
    %709 = vmatpush.bf16.msra.mxu0 0
    %710 = vmatpush.bf16.msra.mxu0 0
    %711 = vmatpush.bf16.msra.mxu0 %v702
    %712 = vmatmul.bf16.gmra.mxu0 %v699
    %v713 = vpop.f32.mrf.mxu0
    %v714 = vadd.f32 0.0, %v713
    %v715 = vpop.f32.mrf.mxu0
    %716 = vdwg.mxu0
    %v718 = vunpack.c.l.b16 %v627
    %v719 = vpack.c.b16 %v718, %v718
    %v720 = vunpack.c.l.b16 %v719
    %721 = vset.pattern.permute.xlu0 0
    %722 = vperm.xlu0 %721, %v720
    %v723 = vpop.permute.xlu0 %722
    %v724 = vperm.slane %v723, %v485
    %v725 = vpack.c.b16 %v724, %v724
    %v727 = vsel %vm509, %v725, 0
    %v730 = vsel %vm644, %v184, 0
    %732 = vmatpush.bf16.msra.mxu0 0
    %733 = vmatpush.bf16.msra.mxu0 0
    %734 = vmatpush.bf16.msra.mxu0 0
    %735 = vmatpush.bf16.msra.mxu0 0
    %736 = vmatpush.bf16.msra.mxu0 0
    %737 = vmatpush.bf16.msra.mxu0 0
    %738 = vmatpush.bf16.msra.mxu0 0
    %739 = vmatpush.bf16.msra.mxu0 %v730
    %740 = vmatmul.bf16.gmra.mxu0 %v727
    %v741 = vpop.f32.mrf.mxu0
    %v742 = vadd.f32 0.0, %v741
    %v743 = vpop.f32.mrf.mxu0
    %744 = vdwg.mxu0
    %v746 = vunpack.c.l.b16 %v628
    %v747 = vpack.c.b16 %v746, %v746
    %v748 = vunpack.c.l.b16 %v747
    %749 = vset.pattern.permute.xlu0 0
    %750 = vperm.xlu0 %749, %v748
    %v751 = vpop.permute.xlu0 %750
    %v752 = vperm.slane %v751, %v485
    %v753 = vpack.c.b16 %v752, %v752
    %v755 = vsel %vm509, %v753, 0
    %v758 = vsel %vm644, %v185, 0
    %760 = vmatpush.bf16.msra.mxu0 0
    %761 = vmatpush.bf16.msra.mxu0 0
    %762 = vmatpush.bf16.msra.mxu0 0
    %763 = vmatpush.bf16.msra.mxu0 0
    %764 = vmatpush.bf16.msra.mxu0 0
    %765 = vmatpush.bf16.msra.mxu0 0
    %766 = vmatpush.bf16.msra.mxu0 0
    %767 = vmatpush.bf16.msra.mxu0 %v758
    %768 = vmatmul.bf16.gmra.mxu0 %v755
    %v769 = vpop.f32.mrf.mxu0
    %v770 = vadd.f32 0.0, %v769
    %v771 = vpop.f32.mrf.mxu0
    %772 = vdwg.mxu0
    %v774 = vunpack.c.l.b16 %v629
    %v775 = vpack.c.b16 %v774, %v774
    %v776 = vunpack.c.l.b16 %v775
    %777 = vset.pattern.permute.xlu0 0
    %778 = vperm.xlu0 %777, %v776
    %v779 = vpop.permute.xlu0 %778
    %v780 = vperm.slane %v779, %v485
    %v781 = vpack.c.b16 %v780, %v780
    %v783 = vsel %vm509, %v781, 0
    %v786 = vsel %vm644, %v186, 0
    %788 = vmatpush.bf16.msra.mxu0 0
    %789 = vmatpush.bf16.msra.mxu0 0
    %790 = vmatpush.bf16.msra.mxu0 0
    %791 = vmatpush.bf16.msra.mxu0 0
    %792 = vmatpush.bf16.msra.mxu0 0
    %793 = vmatpush.bf16.msra.mxu0 0
    %794 = vmatpush.bf16.msra.mxu0 0
    %795 = vmatpush.bf16.msra.mxu0 %v786
    %796 = vmatmul.bf16.gmra.mxu0 %v783
    %v797 = vpop.f32.mrf.mxu0
    %v798 = vadd.f32 0.0, %v797
    %v799 = vpop.f32.mrf.mxu0
    %800 = vdwg.mxu0
    %v802 = vunpack.c.l.b16 %v630
    %v803 = vpack.c.b16 %v802, %v802
    %v804 = vunpack.c.l.b16 %v803
    %805 = vset.pattern.permute.xlu0 0
    %806 = vperm.xlu0 %805, %v804
    %v807 = vpop.permute.xlu0 %806
    %v808 = vperm.slane %v807, %v485
    %v809 = vpack.c.b16 %v808, %v808
    %v811 = vsel %vm509, %v809, 0
    %v814 = vsel %vm644, %v187, 0
    %816 = vmatpush.bf16.msra.mxu0 0
    %817 = vmatpush.bf16.msra.mxu0 0
    %818 = vmatpush.bf16.msra.mxu0 0
    %819 = vmatpush.bf16.msra.mxu0 0
    %820 = vmatpush.bf16.msra.mxu0 0
    %821 = vmatpush.bf16.msra.mxu0 0
    %822 = vmatpush.bf16.msra.mxu0 0
    %823 = vmatpush.bf16.msra.mxu0 %v814
    %824 = vmatmul.bf16.gmra.mxu0 %v811
    %v825 = vpop.f32.mrf.mxu0
    %v826 = vadd.f32 0.0, %v825
    %v827 = vpop.f32.mrf.mxu0
    %828 = vdwg.mxu0
    %v830 = vunpack.c.l.b16 %v631
    %v831 = vpack.c.b16 %v830, %v830
    %v832 = vunpack.c.l.b16 %v831
    %833 = vset.pattern.permute.xlu0 0
    %834 = vperm.xlu0 %833, %v832
    %v835 = vpop.permute.xlu0 %834
    %v836 = vperm.slane %v835, %v485
    %v837 = vpack.c.b16 %v836, %v836
    %v839 = vsel %vm509, %v837, 0
    %v842 = vsel %vm644, %v188, 0
    %844 = vmatpush.bf16.msra.mxu0 0
    %845 = vmatpush.bf16.msra.mxu0 0
    %846 = vmatpush.bf16.msra.mxu0 0
    %847 = vmatpush.bf16.msra.mxu0 0
    %848 = vmatpush.bf16.msra.mxu0 0
    %849 = vmatpush.bf16.msra.mxu0 0
    %850 = vmatpush.bf16.msra.mxu0 0
    %851 = vmatpush.bf16.msra.mxu0 %v842
    %852 = vmatmul.bf16.gmra.mxu0 %v839
    %v853 = vpop.f32.mrf.mxu0
    %v854 = vadd.f32 0.0, %v853
    %v855 = vpop.f32.mrf.mxu0
    %856 = vdwg.mxu0
    %v865 = vrot.slane %v686, 7
    %v866 = vsel %vm494, %v865, %v658
    %v867 = vrot.slane %v714, 6
    %v868 = vsel %vm496, %v867, %v866
    %v869 = vrot.slane %v742, 5
    %v870 = vsel %vm498, %v869, %v868
    %v871 = vrot.slane %v770, 4
    %v872 = vsel %vm500, %v871, %v870
    %v873 = vrot.slane %v798, 3
    %v874 = vsel %vm502, %v873, %v872
    %v875 = vrot.slane %v826, 2
    %v876 = vsel %vm504, %v875, %v874
    %v877 = vrot.slane %v854, 1
    %v878 = vsel %vm506, %v877, %v876
    %v880 = vadd.f32 %v623, %v878
    %881 = vst [vmem:[#allocation4] sm:$0xff] %v880
    %882 = vst.msk [vmem:[#allocation2] sm:$0xff] %vm615, %v513
    // Predicated region
    $region90: #{tpu_custom_call.1} parent=1 // pred_check
      %p883 = pneg %p189
    $region91: #{tpu_custom_call.1} parent=1 // pred_check_branch
      %885 = sbr.rel (%p883) target = $region93
    $region92: #{tpu_custom_call.1} parent=1 // pred_region
      %v886 = vld [vmem:[#allocation3] sm:$0xff]
      %v887 = vrcp.pop %v886
      %v888 = vld [vmem:[#allocation4] sm:$0xff]
      %890 = vset.pattern.permute.xlu0 0
      %891 = vperm.xlu0 %890, %v887
      %v892 = vpop.permute.xlu0 %891
      %v894 = vmul.f32 %v888, %v892
      %v895 = vpack.c.bf16 %v894, %v894
      %v896 = vld [vmem:[#allocation6] sm:$0xf]
      %v897 = vld [vmem:[#allocation17] sm:$0xff]
      %v898 = vld [vmem:[#allocation17 + $0x8] sm:$0xff]
      %v899 = vld [vmem:[#allocation17 + $0x10] sm:$0xff]
      %v900 = vld [vmem:[#allocation17 + $0x18] sm:$0xff]
      %v901 = vld [vmem:[#allocation17 + $0x20] sm:$0xff]
      %v902 = vld [vmem:[#allocation17 + $0x28] sm:$0xff]
      %v903 = vld [vmem:[#allocation17 + $0x30] sm:$0xff]
      %v904 = vld [vmem:[#allocation17 + $0x38] sm:$0xff]
      %v905 = vld [vmem:[#allocation17 + $0x40] sm:$0xff]
      %v906 = vld [vmem:[#allocation17 + $0x48] sm:$0xff]
      %v907 = vld [vmem:[#allocation17 + $0x50] sm:$0xff]
      %v908 = vld [vmem:[#allocation17 + $0x58] sm:$0xff]
      %v909 = vld [vmem:[#allocation17 + $0x60] sm:$0xff]
      %v910 = vld [vmem:[#allocation17 + $0x68] sm:$0xff]
      %v911 = vld [vmem:[#allocation17 + $0x70] sm:$0xff]
      %v912 = vld [vmem:[#allocation17 + $0x78] sm:$0xff]
      %v913 = vld [vmem:[#allocation17 + $0x80] sm:$0xff]
      %v914 = vld [vmem:[#allocation17 + $0x88] sm:$0xff]
      %v915 = vld [vmem:[#allocation17 + $0x90] sm:$0xff]
      %v916 = vld [vmem:[#allocation17 + $0x98] sm:$0xff]
      %v917 = vld [vmem:[#allocation17 + $0xa0] sm:$0xff]
      %v918 = vld [vmem:[#allocation17 + $0xa8] sm:$0xff]
      %v919 = vld [vmem:[#allocation17 + $0xb0] sm:$0xff]
      %v920 = vld [vmem:[#allocation17 + $0xb8] sm:$0xff]
      %v921 = vld [vmem:[#allocation17 + $0xc0] sm:$0xff]
      %v922 = vld [vmem:[#allocation17 + $0xc8] sm:$0xff]
      %v923 = vld [vmem:[#allocation17 + $0xd0] sm:$0xff]
      %v924 = vld [vmem:[#allocation17 + $0xd8] sm:$0xff]
      %v925 = vld [vmem:[#allocation17 + $0xe0] sm:$0xff]
      %v926 = vld [vmem:[#allocation17 + $0xe8] sm:$0xff]
      %v927 = vld [vmem:[#allocation17 + $0xf0] sm:$0xff]
      %v928 = vld [vmem:[#allocation17 + $0xf8] sm:$0xff]
      %v929 = vld [vmem:[#allocation18] sm:$0xff]
      %v930 = vld [vmem:[#allocation18 + $0x8] sm:$0xff]
      %v931 = vld [vmem:[#allocation18 + $0x10] sm:$0xff]
      %v932 = vld [vmem:[#allocation18 + $0x18] sm:$0xff]
      %v933 = vld [vmem:[#allocation18 + $0x20] sm:$0xff]
      %v934 = vld [vmem:[#allocation18 + $0x28] sm:$0xff]
      %v935 = vld [vmem:[#allocation18 + $0x30] sm:$0xff]
      %v936 = vld [vmem:[#allocation18 + $0x38] sm:$0xff]
      %v937 = vld [vmem:[#allocation18 + $0x40] sm:$0xff]
      %v938 = vld [vmem:[#allocation18 + $0x48] sm:$0xff]
      %v939 = vld [vmem:[#allocation18 + $0x50] sm:$0xff]
      %v940 = vld [vmem:[#allocation18 + $0x58] sm:$0xff]
      %v941 = vld [vmem:[#allocation18 + $0x60] sm:$0xff]
      %v942 = vld [vmem:[#allocation18 + $0x68] sm:$0xff]
      %v943 = vld [vmem:[#allocation18 + $0x70] sm:$0xff]
      %v944 = vld [vmem:[#allocation18 + $0x78] sm:$0xff]
      %v945 = vld [vmem:[#allocation18 + $0x80] sm:$0xff]
      %v946 = vld [vmem:[#allocation18 + $0x88] sm:$0xff]
      %v947 = vld [vmem:[#allocation18 + $0x90] sm:$0xff]
      %v948 = vld [vmem:[#allocation18 + $0x98] sm:$0xff]
      %v949 = vld [vmem:[#allocation18 + $0xa0] sm:$0xff]
      %v950 = vld [vmem:[#allocation18 + $0xa8] sm:$0xff]
      %v951 = vld [vmem:[#allocation18 + $0xb0] sm:$0xff]
      %v952 = vld [vmem:[#allocation18 + $0xb8] sm:$0xff]
      %v953 = vld [vmem:[#allocation18 + $0xc0] sm:$0xff]
      %v954 = vld [vmem:[#allocation18 + $0xc8] sm:$0xff]
      %v955 = vld [vmem:[#allocation18 + $0xd0] sm:$0xff]
      %v956 = vld [vmem:[#allocation18 + $0xd8] sm:$0xff]
      %v957 = vld [vmem:[#allocation18 + $0xe0] sm:$0xff]
      %v958 = vld [vmem:[#allocation18 + $0xe8] sm:$0xff]
      %v959 = vld [vmem:[#allocation18 + $0xf0] sm:$0xff]
      %v960 = vld [vmem:[#allocation18 + $0xf8] sm:$0xff]
      %v993 = vunpack.c.l.b16 %v929
      %v994 = vunpack.c.h.b16 %v929
      %v995 = vunpack.c.l.b16 %v930
      %v996 = vunpack.c.h.b16 %v930
      %v997 = vunpack.c.l.b16 %v931
      %v998 = vunpack.c.h.b16 %v931
      %v999 = vunpack.c.l.b16 %v932
      %v1000 = vunpack.c.h.b16 %v932
      %v1001 = vunpack.c.l.b16 %v933
      %v1002 = vunpack.c.h.b16 %v933
      %v1003 = vunpack.c.l.b16 %v934
      %v1004 = vunpack.c.h.b16 %v934
      %v1005 = vunpack.c.l.b16 %v935
      %v1006 = vunpack.c.h.b16 %v935
      %v1007 = vunpack.c.l.b16 %v936
      %v1008 = vunpack.c.h.b16 %v936
      %v1009 = vunpack.c.l.b16 %v937
      %v1010 = vunpack.c.h.b16 %v937
      %v1011 = vunpack.c.l.b16 %v938
      %v1012 = vunpack.c.h.b16 %v938
      %v1013 = vunpack.c.l.b16 %v939
      %v1014 = vunpack.c.h.b16 %v939
      %v1015 = vunpack.c.l.b16 %v940
      %v1016 = vunpack.c.h.b16 %v940
      %v1017 = vunpack.c.l.b16 %v941
      %v1018 = vunpack.c.h.b16 %v941
      %v1019 = vunpack.c.l.b16 %v942
      %v1020 = vunpack.c.h.b16 %v942
      %v1021 = vunpack.c.l.b16 %v943
      %v1022 = vunpack.c.h.b16 %v943
      %v1023 = vunpack.c.l.b16 %v944
      %v1024 = vunpack.c.h.b16 %v944
      %v1025 = vunpack.c.l.b16 %v945
      %v1026 = vunpack.c.h.b16 %v945
      %v1027 = vunpack.c.l.b16 %v946
      %v1028 = vunpack.c.h.b16 %v946
      %v1029 = vunpack.c.l.b16 %v947
      %v1030 = vunpack.c.h.b16 %v947
      %v1031 = vunpack.c.l.b16 %v948
      %v1032 = vunpack.c.h.b16 %v948
      %v1033 = vunpack.c.l.b16 %v949
      %v1034 = vunpack.c.h.b16 %v949
      %v1035 = vunpack.c.l.b16 %v950
      %v1036 = vunpack.c.h.b16 %v950
      %v1037 = vunpack.c.l.b16 %v951
      %v1038 = vunpack.c.h.b16 %v951
      %v1039 = vunpack.c.l.b16 %v952
      %v1040 = vunpack.c.h.b16 %v952
      %v1041 = vunpack.c.l.b16 %v953
      %v1042 = vunpack.c.h.b16 %v953
      %v1043 = vunpack.c.l.b16 %v954
      %v1044 = vunpack.c.h.b16 %v954
      %v1045 = vunpack.c.l.b16 %v955
      %v1046 = vunpack.c.h.b16 %v955
      %v1047 = vunpack.c.l.b16 %v956
      %v1048 = vunpack.c.h.b16 %v956
      %v1049 = vunpack.c.l.b16 %v957
      %v1050 = vunpack.c.h.b16 %v957
      %v1051 = vunpack.c.l.b16 %v958
      %v1052 = vunpack.c.h.b16 %v958
      %v1053 = vunpack.c.l.b16 %v959
      %v1054 = vunpack.c.h.b16 %v959
      %v1055 = vunpack.c.l.b16 %v960
      %v1056 = vunpack.c.h.b16 %v960
      %v1057 = vpack.c.b16 %v997, %v993
      %v1058 = vpack.c.b16 %v998, %v994
      %v1059 = vpack.c.b16 %v999, %v995
      %v1060 = vpack.c.b16 %v1000, %v996
      %v1061 = vpack.c.b16 %v1005, %v1001
      %v1062 = vpack.c.b16 %v1006, %v1002
      %v1063 = vpack.c.b16 %v1007, %v1003
      %v1064 = vpack.c.b16 %v1008, %v1004
      %v1065 = vpack.c.b16 %v1013, %v1009
      %v1066 = vpack.c.b16 %v1014, %v1010
      %v1067 = vpack.c.b16 %v1015, %v1011
      %v1068 = vpack.c.b16 %v1016, %v1012
      %v1069 = vpack.c.b16 %v1021, %v1017
      %v1070 = vpack.c.b16 %v1022, %v1018
      %v1071 = vpack.c.b16 %v1023, %v1019
      %v1072 = vpack.c.b16 %v1024, %v1020
      %v1073 = vpack.c.b16 %v1029, %v1025
      %v1074 = vpack.c.b16 %v1030, %v1026
      %v1075 = vpack.c.b16 %v1031, %v1027
      %v1076 = vpack.c.b16 %v1032, %v1028
      %v1077 = vpack.c.b16 %v1037, %v1033
      %v1078 = vpack.c.b16 %v1038, %v1034
      %v1079 = vpack.c.b16 %v1039, %v1035
      %v1080 = vpack.c.b16 %v1040, %v1036
      %v1081 = vpack.c.b16 %v1045, %v1041
      %v1082 = vpack.c.b16 %v1046, %v1042
      %v1083 = vpack.c.b16 %v1047, %v1043
      %v1084 = vpack.c.b16 %v1048, %v1044
      %v1085 = vpack.c.b16 %v1053, %v1049
      %v1086 = vpack.c.b16 %v1054, %v1050
      %v1087 = vpack.c.b16 %v1055, %v1051
      %v1088 = vpack.c.b16 %v1056, %v1052
      %1121 = vmatpush.bf16.msra.mxu0 %v1085
      %1122 = vmatpush.bf16.msra.mxu0 %v1081
      %1123 = vmatpush.bf16.msra.mxu0 %v1077
      %1124 = vmatpush.bf16.msra.mxu0 %v1073
      %1125 = vmatpush.bf16.msra.mxu0 %v1069
      %1126 = vmatpush.bf16.msra.mxu0 %v1065
      %1127 = vmatpush.bf16.msra.mxu0 %v1061
      %1128 = vmatpush.bf16.msra.mxu0 %v1057
      %1129 = vmatmul.bf16.gmra.mxu0 %v895
      %v1130 = vpop.f32.mrf.mxu0
      %v1131 = vadd.f32 0.0, %v1130
      %v1132 = vpop.f32.mrf.mxu0
      %1133 = vdwg.mxu0
      %1134 = vmatpush.bf16.msra.mxu0 %v1086
      %1135 = vmatpush.bf16.msra.mxu0 %v1082
      %1136 = vmatpush.bf16.msra.mxu0 %v1078
      %1137 = vmatpush.bf16.msra.mxu0 %v1074
      %1138 = vmatpush.bf16.msra.mxu0 %v1070
      %1139 = vmatpush.bf16.msra.mxu0 %v1066
      %1140 = vmatpush.bf16.msra.mxu0 %v1062
      %1141 = vmatpush.bf16.msra.mxu0 %v1058
      %1142 = vmatmul.bf16.gmra.mxu0 %v895
      %v1143 = vpop.f32.mrf.mxu0
      %v1144 = vadd.f32 0.0, %v1143
      %v1145 = vpop.f32.mrf.mxu0
      %1146 = vdwg.mxu0
      %1147 = vmatpush.bf16.msra.mxu0 %v1087
      %1148 = vmatpush.bf16.msra.mxu0 %v1083
      %1149 = vmatpush.bf16.msra.mxu0 %v1079
      %1150 = vmatpush.bf16.msra.mxu0 %v1075
      %1151 = vmatpush.bf16.msra.mxu0 %v1071
      %1152 = vmatpush.bf16.msra.mxu0 %v1067
      %1153 = vmatpush.bf16.msra.mxu0 %v1063
      %1154 = vmatpush.bf16.msra.mxu0 %v1059
      %1155 = vmatmul.bf16.gmra.mxu0 %v895
      %v1156 = vpop.f32.mrf.mxu0
      %v1157 = vadd.f32 0.0, %v1156
      %v1158 = vpop.f32.mrf.mxu0
      %1159 = vdwg.mxu0
      %1160 = vmatpush.bf16.msra.mxu0 %v1088
      %1161 = vmatpush.bf16.msra.mxu0 %v1084
      %1162 = vmatpush.bf16.msra.mxu0 %v1080
      %1163 = vmatpush.bf16.msra.mxu0 %v1076
      %1164 = vmatpush.bf16.msra.mxu0 %v1072
      %1165 = vmatpush.bf16.msra.mxu0 %v1068
      %1166 = vmatpush.bf16.msra.mxu0 %v1064
      %1167 = vmatpush.bf16.msra.mxu0 %v1060
      %1168 = vmatmul.bf16.gmra.mxu0 %v895
      %v1169 = vpop.f32.mrf.mxu0
      %v1170 = vadd.f32 0.0, %v1169
      %v1171 = vpop.f32.mrf.mxu0
      %1172 = vdwg.mxu0
      %v1205 = vunpack.c.l.b16 %v897
      %v1206 = vunpack.c.h.b16 %v897
      %v1207 = vunpack.c.l.b16 %v898
      %v1208 = vunpack.c.h.b16 %v898
      %v1209 = vunpack.c.l.b16 %v899
      %v1210 = vunpack.c.h.b16 %v899
      %v1211 = vunpack.c.l.b16 %v900
      %v1212 = vunpack.c.h.b16 %v900
      %v1213 = vunpack.c.l.b16 %v901
      %v1214 = vunpack.c.h.b16 %v901
      %v1215 = vunpack.c.l.b16 %v902
      %v1216 = vunpack.c.h.b16 %v902
      %v1217 = vunpack.c.l.b16 %v903
      %v1218 = vunpack.c.h.b16 %v903
      %v1219 = vunpack.c.l.b16 %v904
      %v1220 = vunpack.c.h.b16 %v904
      %v1221 = vunpack.c.l.b16 %v905
      %v1222 = vunpack.c.h.b16 %v905
      %v1223 = vunpack.c.l.b16 %v906
      %v1224 = vunpack.c.h.b16 %v906
      %v1225 = vunpack.c.l.b16 %v907
      %v1226 = vunpack.c.h.b16 %v907
      %v1227 = vunpack.c.l.b16 %v908
      %v1228 = vunpack.c.h.b16 %v908
      %v1229 = vunpack.c.l.b16 %v909
      %v1230 = vunpack.c.h.b16 %v909
      %v1231 = vunpack.c.l.b16 %v910
      %v1232 = vunpack.c.h.b16 %v910
      %v1233 = vunpack.c.l.b16 %v911
      %v1234 = vunpack.c.h.b16 %v911
      %v1235 = vunpack.c.l.b16 %v912
      %v1236 = vunpack.c.h.b16 %v912
      %v1237 = vunpack.c.l.b16 %v913
      %v1238 = vunpack.c.h.b16 %v913
      %v1239 = vunpack.c.l.b16 %v914
      %v1240 = vunpack.c.h.b16 %v914
      %v1241 = vunpack.c.l.b16 %v915
      %v1242 = vunpack.c.h.b16 %v915
      %v1243 = vunpack.c.l.b16 %v916
      %v1244 = vunpack.c.h.b16 %v916
      %v1245 = vunpack.c.l.b16 %v917
      %v1246 = vunpack.c.h.b16 %v917
      %v1247 = vunpack.c.l.b16 %v918
      %v1248 = vunpack.c.h.b16 %v918
      %v1249 = vunpack.c.l.b16 %v919
      %v1250 = vunpack.c.h.b16 %v919
      %v1251 = vunpack.c.l.b16 %v920
      %v1252 = vunpack.c.h.b16 %v920
      %v1253 = vunpack.c.l.b16 %v921
      %v1254 = vunpack.c.h.b16 %v921
      %v1255 = vunpack.c.l.b16 %v922
      %v1256 = vunpack.c.h.b16 %v922
      %v1257 = vunpack.c.l.b16 %v923
      %v1258 = vunpack.c.h.b16 %v923
      %v1259 = vunpack.c.l.b16 %v924
      %v1260 = vunpack.c.h.b16 %v924
      %v1261 = vunpack.c.l.b16 %v925
      %v1262 = vunpack.c.h.b16 %v925
      %v1263 = vunpack.c.l.b16 %v926
      %v1264 = vunpack.c.h.b16 %v926
      %v1265 = vunpack.c.l.b16 %v927
      %v1266 = vunpack.c.h.b16 %v927
      %v1267 = vunpack.c.l.b16 %v928
      %v1268 = vunpack.c.h.b16 %v928
      %v1269 = vpack.c.b16 %v1209, %v1205
      %v1270 = vpack.c.b16 %v1210, %v1206
      %v1271 = vpack.c.b16 %v1211, %v1207
      %v1272 = vpack.c.b16 %v1212, %v1208
      %v1273 = vpack.c.b16 %v1217, %v1213
      %v1274 = vpack.c.b16 %v1218, %v1214
      %v1275 = vpack.c.b16 %v1219, %v1215
      %v1276 = vpack.c.b16 %v1220, %v1216
      %v1277 = vpack.c.b16 %v1225, %v1221
      %v1278 = vpack.c.b16 %v1226, %v1222
      %v1279 = vpack.c.b16 %v1227, %v1223
      %v1280 = vpack.c.b16 %v1228, %v1224
      %v1281 = vpack.c.b16 %v1233, %v1229
      %v1282 = vpack.c.b16 %v1234, %v1230
      %v1283 = vpack.c.b16 %v1235, %v1231
      %v1284 = vpack.c.b16 %v1236, %v1232
      %v1285 = vpack.c.b16 %v1241, %v1237
      %v1286 = vpack.c.b16 %v1242, %v1238
      %v1287 = vpack.c.b16 %v1243, %v1239
      %v1288 = vpack.c.b16 %v1244, %v1240
      %v1289 = vpack.c.b16 %v1249, %v1245
      %v1290 = vpack.c.b16 %v1250, %v1246
      %v1291 = vpack.c.b16 %v1251, %v1247
      %v1292 = vpack.c.b16 %v1252, %v1248
      %v1293 = vpack.c.b16 %v1257, %v1253
      %v1294 = vpack.c.b16 %v1258, %v1254
      %v1295 = vpack.c.b16 %v1259, %v1255
      %v1296 = vpack.c.b16 %v1260, %v1256
      %v1297 = vpack.c.b16 %v1265, %v1261
      %v1298 = vpack.c.b16 %v1266, %v1262
      %v1299 = vpack.c.b16 %v1267, %v1263
      %v1300 = vpack.c.b16 %v1268, %v1264
      %1333 = vmatpush.bf16.msra.mxu0 %v1297
      %1334 = vmatpush.bf16.msra.mxu0 %v1293
      %1335 = vmatpush.bf16.msra.mxu0 %v1289
      %1336 = vmatpush.bf16.msra.mxu0 %v1285
      %1337 = vmatpush.bf16.msra.mxu0 %v1281
      %1338 = vmatpush.bf16.msra.mxu0 %v1277
      %1339 = vmatpush.bf16.msra.mxu0 %v1273
      %1340 = vmatpush.bf16.msra.mxu0 %v1269
      %1341 = vmatmul.bf16.gmra.mxu0 %v896
      %v1342 = vpop.f32.mrf.mxu0
      %v1343 = vadd.f32 %v1131, %v1342
      %v1344 = vpop.f32.mrf.mxu0
      %1345 = vdwg.mxu0
      %1346 = vmatpush.bf16.msra.mxu0 %v1298
      %1347 = vmatpush.bf16.msra.mxu0 %v1294
      %1348 = vmatpush.bf16.msra.mxu0 %v1290
      %1349 = vmatpush.bf16.msra.mxu0 %v1286
      %1350 = vmatpush.bf16.msra.mxu0 %v1282
      %1351 = vmatpush.bf16.msra.mxu0 %v1278
      %1352 = vmatpush.bf16.msra.mxu0 %v1274
      %1353 = vmatpush.bf16.msra.mxu0 %v1270
      %1354 = vmatmul.bf16.gmra.mxu0 %v896
      %v1355 = vpop.f32.mrf.mxu0
      %v1356 = vadd.f32 %v1144, %v1355
      %v1357 = vpop.f32.mrf.mxu0
      %1358 = vdwg.mxu0
      %1359 = vmatpush.bf16.msra.mxu0 %v1299
      %1360 = vmatpush.bf16.msra.mxu0 %v1295
      %1361 = vmatpush.bf16.msra.mxu0 %v1291
      %1362 = vmatpush.bf16.msra.mxu0 %v1287
      %1363 = vmatpush.bf16.msra.mxu0 %v1283
      %1364 = vmatpush.bf16.msra.mxu0 %v1279
      %1365 = vmatpush.bf16.msra.mxu0 %v1275
      %1366 = vmatpush.bf16.msra.mxu0 %v1271
      %1367 = vmatmul.bf16.gmra.mxu0 %v896
      %v1368 = vpop.f32.mrf.mxu0
      %v1369 = vadd.f32 %v1157, %v1368
      %v1370 = vpop.f32.mrf.mxu0
      %1371 = vdwg.mxu0
      %1372 = vmatpush.bf16.msra.mxu0 %v1300
      %1373 = vmatpush.bf16.msra.mxu0 %v1296
      %1374 = vmatpush.bf16.msra.mxu0 %v1292
      %1375 = vmatpush.bf16.msra.mxu0 %v1288
      %1376 = vmatpush.bf16.msra.mxu0 %v1284
      %1377 = vmatpush.bf16.msra.mxu0 %v1280
      %1378 = vmatpush.bf16.msra.mxu0 %v1276
      %1379 = vmatpush.bf16.msra.mxu0 %v1272
      %1380 = vmatmul.bf16.gmra.mxu0 %v896
      %v1381 = vpop.f32.mrf.mxu0
      %v1382 = vadd.f32 %v1170, %v1381
      %v1383 = vpop.f32.mrf.mxu0
      %1384 = vdwg.mxu0
      %v1385 = vld [vmem:[#allocation9] sm:$0xff]
      %v1386 = vpack.c.bf16 %v1385, %v1385
      %v1387 = vld [vmem:[#allocation20] sm:$0xff]
      %v1388 = vld [vmem:[#allocation20 + $0x8] sm:$0xff]
      %v1389 = vld [vmem:[#allocation20 + $0x10] sm:$0xff]
      %v1390 = vld [vmem:[#allocation20 + $0x18] sm:$0xff]
      %v1391 = vld [vmem:[#allocation20 + $0x20] sm:$0xff]
      %v1392 = vld [vmem:[#allocation20 + $0x28] sm:$0xff]
      %v1393 = vld [vmem:[#allocation20 + $0x30] sm:$0xff]
      %v1394 = vld [vmem:[#allocation20 + $0x38] sm:$0xff]
      %v1395 = vld [vmem:[#allocation20 + $0x40] sm:$0xff]
      %v1396 = vld [vmem:[#allocation20 + $0x48] sm:$0xff]
      %v1397 = vld [vmem:[#allocation20 + $0x50] sm:$0xff]
      %v1398 = vld [vmem:[#allocation20 + $0x58] sm:$0xff]
      %v1399 = vld [vmem:[#allocation20 + $0x60] sm:$0xff]
      %v1400 = vld [vmem:[#allocation20 + $0x68] sm:$0xff]
      %v1401 = vld [vmem:[#allocation20 + $0x70] sm:$0xff]
      %v1402 = vld [vmem:[#allocation20 + $0x78] sm:$0xff]
      %v1403 = vld [vmem:[#allocation20 + $0x80] sm:$0xff]
      %v1404 = vld [vmem:[#allocation20 + $0x88] sm:$0xff]
      %v1405 = vld [vmem:[#allocation20 + $0x90] sm:$0xff]
      %v1406 = vld [vmem:[#allocation20 + $0x98] sm:$0xff]
      %v1407 = vld [vmem:[#allocation20 + $0xa0] sm:$0xff]
      %v1408 = vld [vmem:[#allocation20 + $0xa8] sm:$0xff]
      %v1409 = vld [vmem:[#allocation20 + $0xb0] sm:$0xff]
      %v1410 = vld [vmem:[#allocation20 + $0xb8] sm:$0xff]
      %v1411 = vld [vmem:[#allocation20 + $0xc0] sm:$0xff]
      %v1412 = vld [vmem:[#allocation20 + $0xc8] sm:$0xff]
      %v1413 = vld [vmem:[#allocation20 + $0xd0] sm:$0xff]
      %v1414 = vld [vmem:[#allocation20 + $0xd8] sm:$0xff]
      %v1415 = vld [vmem:[#allocation20 + $0xe0] sm:$0xff]
      %v1416 = vld [vmem:[#allocation20 + $0xe8] sm:$0xff]
      %v1417 = vld [vmem:[#allocation20 + $0xf0] sm:$0xff]
      %v1418 = vld [vmem:[#allocation20 + $0xf8] sm:$0xff]
      %v1451 = vunpack.c.l.b16 %v1387
      %v1452 = vunpack.c.h.b16 %v1387
      %v1453 = vunpack.c.l.b16 %v1388
      %v1454 = vunpack.c.h.b16 %v1388
      %v1455 = vunpack.c.l.b16 %v1389
      %v1456 = vunpack.c.h.b16 %v1389
      %v1457 = vunpack.c.l.b16 %v1390
      %v1458 = vunpack.c.h.b16 %v1390
      %v1459 = vunpack.c.l.b16 %v1391
      %v1460 = vunpack.c.h.b16 %v1391
      %v1461 = vunpack.c.l.b16 %v1392
      %v1462 = vunpack.c.h.b16 %v1392
      %v1463 = vunpack.c.l.b16 %v1393
      %v1464 = vunpack.c.h.b16 %v1393
      %v1465 = vunpack.c.l.b16 %v1394
      %v1466 = vunpack.c.h.b16 %v1394
      %v1467 = vunpack.c.l.b16 %v1395
      %v1468 = vunpack.c.h.b16 %v1395
      %v1469 = vunpack.c.l.b16 %v1396
      %v1470 = vunpack.c.h.b16 %v1396
      %v1471 = vunpack.c.l.b16 %v1397
      %v1472 = vunpack.c.h.b16 %v1397
      %v1473 = vunpack.c.l.b16 %v1398
      %v1474 = vunpack.c.h.b16 %v1398
      %v1475 = vunpack.c.l.b16 %v1399
      %v1476 = vunpack.c.h.b16 %v1399
      %v1477 = vunpack.c.l.b16 %v1400
      %v1478 = vunpack.c.h.b16 %v1400
      %v1479 = vunpack.c.l.b16 %v1401
      %v1480 = vunpack.c.h.b16 %v1401
      %v1481 = vunpack.c.l.b16 %v1402
      %v1482 = vunpack.c.h.b16 %v1402
      %v1483 = vunpack.c.l.b16 %v1403
      %v1484 = vunpack.c.h.b16 %v1403
      %v1485 = vunpack.c.l.b16 %v1404
      %v1486 = vunpack.c.h.b16 %v1404
      %v1487 = vunpack.c.l.b16 %v1405
      %v1488 = vunpack.c.h.b16 %v1405
      %v1489 = vunpack.c.l.b16 %v1406
      %v1490 = vunpack.c.h.b16 %v1406
      %v1491 = vunpack.c.l.b16 %v1407
      %v1492 = vunpack.c.h.b16 %v1407
      %v1493 = vunpack.c.l.b16 %v1408
      %v1494 = vunpack.c.h.b16 %v1408
      %v1495 = vunpack.c.l.b16 %v1409
      %v1496 = vunpack.c.h.b16 %v1409
      %v1497 = vunpack.c.l.b16 %v1410
      %v1498 = vunpack.c.h.b16 %v1410
      %v1499 = vunpack.c.l.b16 %v1411
      %v1500 = vunpack.c.h.b16 %v1411
      %v1501 = vunpack.c.l.b16 %v1412
      %v1502 = vunpack.c.h.b16 %v1412
      %v1503 = vunpack.c.l.b16 %v1413
      %v1504 = vunpack.c.h.b16 %v1413
      %v1505 = vunpack.c.l.b16 %v1414
      %v1506 = vunpack.c.h.b16 %v1414
      %v1507 = vunpack.c.l.b16 %v1415
      %v1508 = vunpack.c.h.b16 %v1415
      %v1509 = vunpack.c.l.b16 %v1416
      %v1510 = vunpack.c.h.b16 %v1416
      %v1511 = vunpack.c.l.b16 %v1417
      %v1512 = vunpack.c.h.b16 %v1417
      %v1513 = vunpack.c.l.b16 %v1418
      %v1514 = vunpack.c.h.b16 %v1418
      %v1515 = vpack.c.b16 %v1455, %v1451
      %v1516 = vpack.c.b16 %v1456, %v1452
      %v1517 = vpack.c.b16 %v1457, %v1453
      %v1518 = vpack.c.b16 %v1458, %v1454
      %v1519 = vpack.c.b16 %v1463, %v1459
      %v1520 = vpack.c.b16 %v1464, %v1460
      %v1521 = vpack.c.b16 %v1465, %v1461
      %v1522 = vpack.c.b16 %v1466, %v1462
      %v1523 = vpack.c.b16 %v1471, %v1467
      %v1524 = vpack.c.b16 %v1472, %v1468
      %v1525 = vpack.c.b16 %v1473, %v1469
      %v1526 = vpack.c.b16 %v1474, %v1470
      %v1527 = vpack.c.b16 %v1479, %v1475
      %v1528 = vpack.c.b16 %v1480, %v1476
      %v1529 = vpack.c.b16 %v1481, %v1477
      %v1530 = vpack.c.b16 %v1482, %v1478
      %v1531 = vpack.c.b16 %v1487, %v1483
      %v1532 = vpack.c.b16 %v1488, %v1484
      %v1533 = vpack.c.b16 %v1489, %v1485
      %v1534 = vpack.c.b16 %v1490, %v1486
      %v1535 = vpack.c.b16 %v1495, %v1491
      %v1536 = vpack.c.b16 %v1496, %v1492
      %v1537 = vpack.c.b16 %v1497, %v1493
      %v1538 = vpack.c.b16 %v1498, %v1494
      %v1539 = vpack.c.b16 %v1503, %v1499
      %v1540 = vpack.c.b16 %v1504, %v1500
      %v1541 = vpack.c.b16 %v1505, %v1501
      %v1542 = vpack.c.b16 %v1506, %v1502
      %v1543 = vpack.c.b16 %v1511, %v1507
      %v1544 = vpack.c.b16 %v1512, %v1508
      %v1545 = vpack.c.b16 %v1513, %v1509
      %v1546 = vpack.c.b16 %v1514, %v1510
      %1579 = vmatpush.bf16.msra.mxu0 %v1543
      %1580 = vmatpush.bf16.msra.mxu0 %v1539
      %1581 = vmatpush.bf16.msra.mxu0 %v1535
      %1582 = vmatpush.bf16.msra.mxu0 %v1531
      %1583 = vmatpush.bf16.msra.mxu0 %v1527
      %1584 = vmatpush.bf16.msra.mxu0 %v1523
      %1585 = vmatpush.bf16.msra.mxu0 %v1519
      %1586 = vmatpush.bf16.msra.mxu0 %v1515
      %1587 = vmatmul.bf16.gmra.mxu0 %v1386
      %v1588 = vpop.f32.mrf.mxu0
      %v1589 = vadd.f32 0.0, %v1588
      %v1590 = vpop.f32.mrf.mxu0
      %1591 = vdwg.mxu0
      %1592 = vmatpush.bf16.msra.mxu0 %v1544
      %1593 = vmatpush.bf16.msra.mxu0 %v1540
      %1594 = vmatpush.bf16.msra.mxu0 %v1536
      %1595 = vmatpush.bf16.msra.mxu0 %v1532
      %1596 = vmatpush.bf16.msra.mxu0 %v1528
      %1597 = vmatpush.bf16.msra.mxu0 %v1524
      %1598 = vmatpush.bf16.msra.mxu0 %v1520
      %1599 = vmatpush.bf16.msra.mxu0 %v1516
      %1600 = vmatmul.bf16.gmra.mxu0 %v1386
      %v1601 = vpop.f32.mrf.mxu0
      %v1602 = vadd.f32 0.0, %v1601
      %v1603 = vpop.f32.mrf.mxu0
      %1604 = vdwg.mxu0
      %1605 = vmatpush.bf16.msra.mxu0 %v1545
      %1606 = vmatpush.bf16.msra.mxu0 %v1541
      %1607 = vmatpush.bf16.msra.mxu0 %v1537
      %1608 = vmatpush.bf16.msra.mxu0 %v1533
      %1609 = vmatpush.bf16.msra.mxu0 %v1529
      %1610 = vmatpush.bf16.msra.mxu0 %v1525
      %1611 = vmatpush.bf16.msra.mxu0 %v1521
      %1612 = vmatpush.bf16.msra.mxu0 %v1517
      %1613 = vmatmul.bf16.gmra.mxu0 %v1386
      %v1614 = vpop.f32.mrf.mxu0
      %v1615 = vadd.f32 0.0, %v1614
      %v1616 = vpop.f32.mrf.mxu0
      %1617 = vdwg.mxu0
      %1618 = vmatpush.bf16.msra.mxu0 %v1546
      %1619 = vmatpush.bf16.msra.mxu0 %v1542
      %1620 = vmatpush.bf16.msra.mxu0 %v1538
      %1621 = vmatpush.bf16.msra.mxu0 %v1534
      %1622 = vmatpush.bf16.msra.mxu0 %v1530
      %1623 = vmatpush.bf16.msra.mxu0 %v1526
      %1624 = vmatpush.bf16.msra.mxu0 %v1522
      %1625 = vmatpush.bf16.msra.mxu0 %v1518
      %1626 = vmatmul.bf16.gmra.mxu0 %v1386
      %v1627 = vpop.f32.mrf.mxu0
      %v1628 = vadd.f32 0.0, %v1627
      %v1629 = vpop.f32.mrf.mxu0
      %1630 = vdwg.mxu0
      %v1631 = vadd.f32 %v1343, %v1589
      %v1632 = vadd.f32 %v1356, %v1602
      %v1633 = vadd.f32 %v1369, %v1615
      %v1634 = vadd.f32 %v1382, %v1628
      %v1635 = vld [vmem:[%s11] sm:$0xf]
      %v1637 = vperm.slane %v1635, 0
      %v1638 = vperm.slane %v1635, 1
      %v1639 = vperm.slane %v1635, 2
      %v1640 = vperm.slane %v1635, 3
      %v1645 = vadd.f32 %v1631, %v1637
      %v1646 = vadd.f32 %v1632, %v1638
      %v1647 = vadd.f32 %v1633, %v1639
      %v1648 = vadd.f32 %v1634, %v1640
      %v1649 = vxor.u32 %v1645, 2147483648
      %v1650 = vmul.f32 %v1649, 1.442695
      %v1651 = vpow.pop %v1650
      %v1652 = vadd.f32 %v1651, 1.0
      %v1653 = vrcp.pop %v1652
      %v1654 = vmul.f32 %v1652, %v1653
      %v1655 = vsub.f32 1.0, %v1654
      %v1656 = vmul.f32 %v1653, %v1655
      %v1657 = vadd.f32 %v1653, %v1656
      %vm1658 = vweird.f32 %v1652
      %vm1659 = vweird.f32 %v1653
      %vm1660 = vmor %vm1658, %vm1659
      %v1661 = vsel %vm1660, %v1653, %v1657
      %v1662 = vand.u32 2147483647, %v1652
      %vm1663 = vcmp.eq.f32.partialorder %v1662, 8.507059e+37
      %v1664 = vand.u32 %v1652, 2147483648
      %v1665 = vor.u32 1.1754944e-38, %v1664
      %v1666 = vsel %vm1663, %v1665, %v1661
      %v1667 = vmul.f32 1.0, %v1666
      %v1668 = vxor.u32 %v1646, 2147483648
      %v1669 = vmul.f32 %v1668, 1.442695
      %v1670 = vpow.pop %v1669
      %v1671 = vadd.f32 %v1670, 1.0
      %v1672 = vrcp.pop %v1671
      %v1673 = vmul.f32 %v1671, %v1672
      %v1674 = vsub.f32 1.0, %v1673
      %v1675 = vmul.f32 %v1672, %v1674
      %v1676 = vadd.f32 %v1672, %v1675
      %vm1677 = vweird.f32 %v1671
      %vm1678 = vweird.f32 %v1672
      %vm1679 = vmor %vm1677, %vm1678
      %v1680 = vsel %vm1679, %v1672, %v1676
      %v1681 = vand.u32 2147483647, %v1671
      %vm1682 = vcmp.eq.f32.partialorder %v1681, 8.507059e+37
      %v1683 = vand.u32 %v1671, 2147483648
      %v1684 = vor.u32 1.1754944e-38, %v1683
      %v1685 = vsel %vm1682, %v1684, %v1680
      %v1686 = vmul.f32 1.0, %v1685
      %v1687 = vtanh.pop %v1647
      %v1688 = vxor.u32 %v1648, 2147483648
      %v1689 = vmul.f32 %v1688, 1.442695
      %v1690 = vpow.pop %v1689
      %v1691 = vadd.f32 %v1690, 1.0
      %v1692 = vrcp.pop %v1691
      %v1693 = vmul.f32 %v1691, %v1692
      %v1694 = vsub.f32 1.0, %v1693
      %v1695 = vmul.f32 %v1692, %v1694
      %v1696 = vadd.f32 %v1692, %v1695
      %vm1697 = vweird.f32 %v1691
      %vm1698 = vweird.f32 %v1692
      %vm1699 = vmor %vm1697, %vm1698
      %v1700 = vsel %vm1699, %v1692, %v1696
      %v1701 = vand.u32 2147483647, %v1691
      %vm1702 = vcmp.eq.f32.partialorder %v1701, 8.507059e+37
      %v1703 = vand.u32 %v1691, 2147483648
      %v1704 = vor.u32 1.1754944e-38, %v1703
      %v1705 = vsel %vm1702, %v1704, %v1700
      %v1706 = vmul.f32 1.0, %v1705
      %v1707 = vld [vmem:[#allocation11] sm:$0xff]
      %v1708 = vmul.f32 %v1686, %v1707
      %v1709 = vmul.f32 %v1667, %v1687
      %v1710 = vadd.f32 %v1708, %v1709
      %v1711 = vtanh.pop %v1710
      %v1712 = vmul.f32 %v1706, %v1711
      %1713 = vst [vmem:[#allocation21] sm:$0xff] %v1712
      %1714 = vst [vmem:[#allocation22] sm:$0xff] %v1710
      %v1715 = vpack.c.bf16 %v1712, %v1712
      %1716 = vst [vmem:[#allocation24] sm:$0xf] %v1715
    $region93: #{tpu_custom_call.1} parent=1 // pred_fallthru
      _
    // Predicated region
    $region94: #{tpu_custom_call.1} parent=1 // pred_check
      _
    $region95: #{tpu_custom_call.1} parent=1 // pred_check_branch
      %1718 = sbr.rel (0) target = $region97
    $region96: #{tpu_custom_call.1} parent=1 // pred_region
      %1720 = vsyncadd [#allocation8], 0
      %s1722 = sshll.u32 [#allocation21], 4
      %s1723 = int_to_ptr.vmem [resolvable:$true] %s1722
      %s1724 = sshll.u32 %s12, 4
      %s1725 = int_to_ptr.hbm [resolvable:$true] %s1724
      %1727 = dma.vmem_to_hbm [thread:$0]  %s1723, 128, %s1725, [#allocation8]
    $region97: #{tpu_custom_call.1} parent=1 // pred_fallthru
      _
    // Predicated region
    $region98: #{tpu_custom_call.1} parent=1 // pred_check
      _
    $region99: #{tpu_custom_call.1} parent=1 // pred_check_branch
      %1729 = sbr.rel (0) target = $region101
    $region100: #{tpu_custom_call.1} parent=1 // pred_region
      %1731 = vsyncadd [#allocation23], 0
      %s1733 = sshll.u32 [#allocation22], 4
      %s1734 = int_to_ptr.vmem [resolvable:$true] %s1733
      %s1735 = sshll.u32 %s13, 4
      %s1736 = int_to_ptr.hbm [resolvable:$true] %s1735
      %1738 = dma.vmem_to_hbm [thread:$0]  %s1734, 128, %s1736, [#allocation23]
    $region101: #{tpu_custom_call.1} parent=1 // pred_fallthru
      _
    // Predicated region
    $region102: #{tpu_custom_call.1} parent=1 // pred_check
      _
    $region103: #{tpu_custom_call.1} parent=1 // pred_check_branch
      %1740 = sbr.rel (0) target = $region105
    $region104: #{tpu_custom_call.1} parent=1 // pred_region
      %1742 = vsyncadd [#allocation23], 0
      %s1744 = sshll.u32 [#allocation24], 4
      %s1745 = int_to_ptr.vmem [resolvable:$true] %s1744
      %s1746 = sshll.u32 %s14, 4
      %s1747 = int_to_ptr.hbm [resolvable:$true] %s1746
      %1749 = dma.vmem_to_hbm [thread:$0]  %s1745, 64, %s1747, [#allocation23]
    $region105: #{tpu_custom_call.1} parent=1 // pred_fallthru
      _
    // Predicated region
    $region106: #{tpu_custom_call.1} parent=1 // pred_check
      _
    $region107: #{tpu_custom_call.1} parent=1 // pred_check_branch
      %1751 = sbr.rel (0) target = $region109
    $region108: #{tpu_custom_call.1} parent=1 // pred_region
      %1753 = dma.done [#allocation8], 128
    $region109: #{tpu_custom_call.1} parent=1 // pred_fallthru
      _
    // Predicated region
    $region110: #{tpu_custom_call.1} parent=1 // pred_check
      _
    $region111: #{tpu_custom_call.1} parent=1 // pred_check_branch
      %1755 = sbr.rel (0) target = $region113
    $region112: #{tpu_custom_call.1} parent=1 // pred_region
      %1757 = dma.done [#allocation23], 128
    $region113: #{tpu_custom_call.1} parent=1 // pred_fallthru
      _
    // Predicated region
    $region114: #{tpu_custom_call.1} parent=1 // pred_check
      _
    $region115: #{tpu_custom_call.1} parent=1 // pred_check_branch
      %1759 = sbr.rel (0) target = $region117
    $region116: #{tpu_custom_call.1} parent=1 // pred_region
      %1761 = dma.done [#allocation23], 64
    $region117: #{tpu_custom_call.1} parent=1 // pred_fallthru
      _
    %1762 = vsyncpa [#allocation7], 1
    %1763 = vsyncpa [#allocation10], 1
    %1764 = vsyncpa [#allocation13], 1
    %1765 = vsyncpa [#allocation16], 1
    %1766 = vsyncpa [#allocation19], 1
    %1767 = vsyncpa [#allocation8], 1
    %1768 = vsyncpa [#allocation23], 1

</llo_original>
